<compile_context>
chip_gen: v6e
topology: v6e:2x2x1
jax: 0.10.0
libtpu: 0.0.40
codegen_flags: <defaults>
</compile_context>

<pallas_src>
import functools

import jax
import jax.numpy as jnp
from jax.experimental import pallas as pl
from jax.experimental.pallas import tpu as pltpu

K = 5      # conv kernel size (both convs)
P = 2      # conv padding (both convs)
LEAD = 8   # 8-row aligned halo at each end of the staging scratch buffers


def _chromosome_kernel(x_ref, w1_ref, b1_ref, w2_ref, b2_ref, wf_ref, bf_ref,
                       out_ref, xs_ref, h1p_ref, *, L, Lps, TB):
    """One grid step: TB samples, Lps (8-aligned) staged rows per sample."""
    R = TB * Lps                     # flat rows handled by this step
    C_in = x_ref.shape[1]

    # ---- stage x with zeroed halo rows so the conv1 taps are plain shifted
    #      slices of one buffer (in-kernel im2col; nothing expanded in HBM).
    #      Scratch VMEM is NOT zero-initialized: the halo stores must stay.
    xs_ref[pl.ds(0, LEAD), :] = jnp.zeros((LEAD, C_in), jnp.float32)
    xs_ref[pl.ds(LEAD, R), :] = x_ref[...]
    xs_ref[pl.ds(LEAD + R, LEAD), :] = jnp.zeros((LEAD, C_in), jnp.float32)

    # ---- conv1 (+ bias + relu): 5 shifted-tap matmuls, M=R, K=C_in, N=32 ----
    acc1 = jnp.zeros((R, 32), jnp.float32)
    for k in range(K):
        acc1 = acc1 + jnp.dot(xs_ref[pl.ds(LEAD - P + k, R), :], w1_ref[k],
                              preferred_element_type=jnp.float32)
    h1 = jnp.maximum(acc1 + b1_ref[...], 0.0)                        # (R, 32)

    # ---- stage h1; zero the per-sample boundary rows (this *is* conv2's
    #      zero padding between samples) plus the global halo rows.
    h1p_ref[pl.ds(0, LEAD), :] = jnp.zeros((LEAD, 32), jnp.float32)
    h1p_ref[pl.ds(LEAD, R), :] = h1
    h1p_ref[pl.ds(LEAD + R, LEAD), :] = jnp.zeros((LEAD, 32), jnp.float32)
    zpad = jnp.zeros((P, 32), jnp.float32)
    for b in range(TB):
        h1p_ref[pl.ds(LEAD + b * Lps, P), :] = zpad               # left pad rows
        h1p_ref[pl.ds(LEAD + b * Lps + P + L, P), :] = zpad       # right pad rows

    # ---- conv2 (+ bias + relu): 5 shifted-tap matmuls, M=R, K=32, N=64 ----
    acc2 = jnp.zeros((R, 64), jnp.float32)
    for k in range(K):
        acc2 = acc2 + jnp.dot(h1p_ref[pl.ds(LEAD - P + k, R), :], w2_ref[k],
                              preferred_element_type=jnp.float32)
    h2 = jnp.maximum(acc2 + b2_ref[...], 0.0)                        # (R, 64)

    # ---- folded fc1+fc2 head: per-sample weighted sum of h2 against the
    #      (Lps, 64) folded weight (exactly zero on the non-valid rows, so
    #      the boundary/pad rows of h2 are discarded), accumulated into one
    #      lane-dense (1, 1, TB) row.  No N=1 matmul, no (TB, R) one-hot.
    wfv = wf_ref[...]                                                # (Lps, 64)
    lane = jax.lax.broadcasted_iota(jnp.int32, (1, 1, TB), 2)
    row = jnp.zeros((1, 1, TB), jnp.float32)
    for b in range(TB):
        s_b = jnp.sum(h2[b * Lps:(b + 1) * Lps, :] * wfv)            # scalar
        row = row + jnp.where(lane == b, s_b, 0.0)
    out_ref[...] = row + bf_ref[...]                                 # (1, 1, TB)


def chromosome_cnn_forward(x_ncw, params, *, batch_tile=None):
    """x_ncw: (B, C_in, L) float32 (PyTorch NCW layout).  Returns (B, 1)."""
    B, C_in, L = x_ncw.shape
    TB = int(batch_tile) if batch_tile is not None else min(B, 8)
    TB = max(1, min(TB, B))
    nb = -(-B // TB)                       # cdiv over the batch
    B_pad = nb * TB
    Lp = L + 2 * P                         # valid + conv-pad rows per sample
    Lps = -(-Lp // 8) * 8                  # ...rounded up to a sublane multiple
    R = TB * Lps                           # flat rows per grid step

    # ---------------- layout plumbing / weight prep in plain JAX ------------
    x_nlc = jnp.transpose(x_ncw, (0, 2, 1)).astype(jnp.float32)      # (B, L, C)
    if B_pad != B:
        x_nlc = jnp.pad(x_nlc, ((0, B_pad - B), (0, 0), (0, 0)))
    # Per-sample row layout: [P zeros | L data rows | zeros up to Lps].
    x_rows = jnp.pad(x_nlc, ((0, 0), (P, Lps - L - P), (0, 0)))
    x_flat = x_rows.reshape(B_pad * Lps, C_in)

    w1t = jnp.transpose(params["w1"], (2, 1, 0)).astype(jnp.float32)  # (K,C,32)
    b1 = params["b1"].reshape(1, 32).astype(jnp.float32)
    w2t = jnp.transpose(params["w2"], (2, 1, 0)).astype(jnp.float32)  # (K,32,64)
    b2 = params["b2"].reshape(1, 64).astype(jnp.float32)

    # Fold fc1+fc2 (exact: there is no nonlinearity between them).
    wfold = params["wfc2"] @ params["wfc1"]                          # (1, 64*L)
    bfold = (params["bfc1"] @ params["wfc2"].T
             + params["bfc2"]).reshape(1, 1).astype(jnp.float32)     # (1, 1)
    # wf[e, c] = wfold[c*L + (e - P)] on valid rows e in [P, P+L), else 0.
    wf_core = wfold.reshape(64, L).T                                 # (L, 64)
    wf = jnp.pad(wf_core, ((P, Lps - L - P), (0, 0))).astype(jnp.float32)

    kernel = functools.partial(_chromosome_kernel, L=L, Lps=Lps, TB=TB)

    out3 = pl.pallas_call(
        kernel,
        out_shape=jax.ShapeDtypeStruct((nb, 1, TB), jnp.float32),
        grid_spec=pltpu.PrefetchScalarGridSpec(
            num_scalar_prefetch=0,
            grid=(nb,),
            in_specs=[
                pl.BlockSpec((R, C_in), lambda i: (i, 0)),         # x rows
                pl.BlockSpec((K, C_in, 32), lambda i: (0, 0, 0)),  # conv1 W
                pl.BlockSpec((1, 32), lambda i: (0, 0)),           # conv1 b
                pl.BlockSpec((K, 32, 64), lambda i: (0, 0, 0)),    # conv2 W
                pl.BlockSpec((1, 64), lambda i: (0, 0)),           # conv2 b
                pl.BlockSpec((Lps, 64), lambda i: (0, 0)),         # folded fc W
                pl.BlockSpec((1, 1), lambda i: (0, 0)),            # folded fc b
            ],
            # Disjoint lane-dense output row per grid step.
            out_specs=pl.BlockSpec((1, 1, TB), lambda i: (i, 0, 0)),
            scratch_shapes=[
                pltpu.VMEM((R + 2 * LEAD, C_in), jnp.float32),     # staged x
                pltpu.VMEM((R + 2 * LEAD, 32), jnp.float32),       # staged h1
            ],
        ),
        compiler_params=pltpu.CompilerParams(
            dimension_semantics=("parallel",),
            vmem_limit_bytes=48 * 1024 * 1024,
        ),
    )(x_flat, w1t, b1, w2t, b2, wf, bfold)

    return out3.reshape(B_pad, 1)[:B]


def reference_forward(x_ncw, params):
    """Plain-JAX re-implementation of the PyTorch forward (for verification)."""
    dn = ("NCH", "OIH", "NCH")
    h1 = jax.lax.conv_general_dilated(x_ncw, params["w1"], (1,), [(P, P)],
                                      dimension_numbers=dn)
    h1 = jax.nn.relu(h1 + params["b1"][None, :, None])
    h2 = jax.lax.conv_general_dilated(h1, params["w2"], (1,), [(P, P)],
                                      dimension_numbers=dn)
    h2 = jax.nn.relu(h2 + params["b2"][None, :, None])
    flat = h2.reshape(h2.shape[0], -1)   # channel-major flatten (torch.flatten)
    z1 = flat @ params["wfc1"].T + params["bfc1"]
    z2 = z1 @ params["wfc2"].T + params["bfc2"]
    return z2


if __name__ == "__main__":
    B, C_in, L = 2, 4, 16  # batch=2, input_dim=4, seq_len=16

    key = jax.random.PRNGKey(0)
    ks = jax.random.split(key, 9)
    params = {
        "w1":   jax.random.normal(ks[0], (32, C_in, K), jnp.float32) * 0.1,
        "b1":   jax.random.normal(ks[1], (32,), jnp.float32) * 0.1,
        "w2":   jax.random.normal(ks[2], (64, 32, K), jnp.float32) * 0.1,
        "b2":   jax.random.normal(ks[3], (64,), jnp.float32) * 0.1,
        "wfc1": jax.random.normal(ks[4], (128, 64 * L), jnp.float32) * 0.05,
        "bfc1": jax.random.normal(ks[5], (128,), jnp.float32) * 0.1,
        "wfc2": jax.random.normal(ks[6], (1, 128), jnp.float32) * 0.1,
        "bfc2": jax.random.normal(ks[7], (1,), jnp.float32) * 0.1,
    }
    x = jax.random.normal(ks[8], (B, C_in, L), jnp.float32)

    out = chromosome_cnn_forward(x, params)
    out = jax.block_until_ready(out)

    ref = jax.block_until_ready(reference_forward(x, params))
    assert out.shape == (B, 1), out.shape
    assert jnp.allclose(out, ref, rtol=1e-3, atol=1e-3), (out, ref)

    print("KERNEL_OK")
</pallas_src>

<mosaic_0001>
module attributes {stable_mosaic.version = 11 : i64} {
  func.func @_chromosome_kernel(%arg0: i32, %arg1: memref<48x4xf32, #tpu.memory_space<vmem>>, %arg2: memref<5x4x32xf32, #tpu.memory_space<vmem>>, %arg3: memref<1x32xf32, #tpu.memory_space<vmem>>, %arg4: memref<5x32x64xf32, #tpu.memory_space<vmem>>, %arg5: memref<1x64xf32, #tpu.memory_space<vmem>>, %arg6: memref<24x64xf32, #tpu.memory_space<vmem>>, %arg7: memref<1x1xf32, #tpu.memory_space<vmem>>, %arg8: memref<1x1x2xf32, #tpu.memory_space<vmem>>, %arg9: memref<64x4xf32, #tpu.memory_space<vmem>>, %arg10: memref<64x32xf32, #tpu.memory_space<vmem>>) attributes {dimension_semantics = [#tpu.dimension_semantics<parallel>], iteration_bounds = array<i64: 1>, scalar_prefetch = 0 : i64, scratch_operands = 2 : i64, tpu.core_type = #tpu.core_type<tc>, window_params = [{transform_indices = @transform_0, window_bounds = array<i64: 48, 4>}, {pipeline_mode = #tpu.pipeline_mode<synchronous>, transform_indices = @transform_1, window_bounds = array<i64: 5, 4, 32>}, {pipeline_mode = #tpu.pipeline_mode<synchronous>, transform_indices = @transform_2, window_bounds = array<i64: 1, 32>}, {pipeline_mode = #tpu.pipeline_mode<synchronous>, transform_indices = @transform_3, window_bounds = array<i64: 5, 32, 64>}, {pipeline_mode = #tpu.pipeline_mode<synchronous>, transform_indices = @transform_4, window_bounds = array<i64: 1, 64>}, {pipeline_mode = #tpu.pipeline_mode<synchronous>, transform_indices = @transform_5, window_bounds = array<i64: 24, 64>}, {pipeline_mode = #tpu.pipeline_mode<synchronous>, transform_indices = @transform_6, window_bounds = array<i64: 1, 1>}, {transform_indices = @transform_7, window_bounds = array<i64: 1, 1, 2>}]} {
    %cst = arith.constant 0.000000e+00 : f32
    %0 = vector.broadcast %cst : f32 to vector<8x4xf32>
    %c0 = arith.constant 0 : index
    %c0_0 = arith.constant 0 : index
    %1 = vector.load %arg9[%c0, %c0_0] : memref<64x4xf32, #tpu.memory_space<vmem>>, vector<8x4xf32>
    tpu.vector_store %arg9[%c0, %c0_0], %0 {strides = array<i32>} : memref<64x4xf32, #tpu.memory_space<vmem>>, vector<8x4xf32>,
    %c0_1 = arith.constant 0 : index
    %c0_2 = arith.constant 0 : index
    %2 = vector.load %arg1[%c0_1, %c0_2] : memref<48x4xf32, #tpu.memory_space<vmem>>, vector<48x4xf32>
    %c8 = arith.constant 8 : index
    %c0_3 = arith.constant 0 : index
    %3 = vector.load %arg9[%c8, %c0_3] : memref<64x4xf32, #tpu.memory_space<vmem>>, vector<48x4xf32>
    tpu.vector_store %arg9[%c8, %c0_3], %2 {strides = array<i32>} : memref<64x4xf32, #tpu.memory_space<vmem>>, vector<48x4xf32>,
    %cst_4 = arith.constant 0.000000e+00 : f32
    %4 = vector.broadcast %cst_4 : f32 to vector<8x4xf32>
    %c56 = arith.constant 56 : index
    %c0_5 = arith.constant 0 : index
    %5 = vector.load %arg9[%c56, %c0_5] : memref<64x4xf32, #tpu.memory_space<vmem>>, vector<8x4xf32>
    tpu.vector_store %arg9[%c56, %c0_5], %4 {strides = array<i32>} : memref<64x4xf32, #tpu.memory_space<vmem>>, vector<8x4xf32>,
    %cst_6 = arith.constant 0.000000e+00 : f32
    %6 = vector.broadcast %cst_6 : f32 to vector<48x32xf32>
    %c6 = arith.constant 6 : index
    %c0_7 = arith.constant 0 : index
    %7 = vector.load %arg9[%c6, %c0_7] : memref<64x4xf32, #tpu.memory_space<vmem>>, vector<48x4xf32>
    %c0_8 = arith.constant 0 : index
    %c0_9 = arith.constant 0 : index
    %c0_10 = arith.constant 0 : index
    %8 = vector.load %arg2[%c0_8, %c0_9, %c0_10] : memref<5x4x32xf32, #tpu.memory_space<vmem>>, vector<1x4x32xf32>
    %9 = vector.shape_cast %8 : vector<1x4x32xf32> to vector<4x32xf32>
    %cst_11 = arith.constant dense<0.000000e+00> : vector<48x32xf32>
    %10 = tpu.matmul %7, %9, %cst_11 {dimension_numbers = #tpu.dot_dimension_numbers<[1], [0], [0], [1], [0, 0, 1, 1], [], []>} : vector<48x4xf32>, vector<4x32xf32>, vector<48x32xf32> -> vector<48x32xf32>
    %11 = arith.addf %6, %10 : vector<48x32xf32>
    %c7 = arith.constant 7 : index
    %c0_12 = arith.constant 0 : index
    %12 = vector.load %arg9[%c7, %c0_12] : memref<64x4xf32, #tpu.memory_space<vmem>>, vector<48x4xf32>
    %c1 = arith.constant 1 : index
    %c0_13 = arith.constant 0 : index
    %c0_14 = arith.constant 0 : index
    %13 = vector.load %arg2[%c1, %c0_13, %c0_14] : memref<5x4x32xf32, #tpu.memory_space<vmem>>, vector<1x4x32xf32>
    %14 = vector.shape_cast %13 : vector<1x4x32xf32> to vector<4x32xf32>
    %cst_15 = arith.constant dense<0.000000e+00> : vector<48x32xf32>
    %15 = tpu.matmul %12, %14, %cst_15 {dimension_numbers = #tpu.dot_dimension_numbers<[1], [0], [0], [1], [0, 0, 1, 1], [], []>} : vector<48x4xf32>, vector<4x32xf32>, vector<48x32xf32> -> vector<48x32xf32>
    %16 = arith.addf %11, %15 : vector<48x32xf32>
    %c8_16 = arith.constant 8 : index
    %c0_17 = arith.constant 0 : index
    %17 = vector.load %arg9[%c8_16, %c0_17] : memref<64x4xf32, #tpu.memory_space<vmem>>, vector<48x4xf32>
    %c2 = arith.constant 2 : index
    %c0_18 = arith.constant 0 : index
    %c0_19 = arith.constant 0 : index
    %18 = vector.load %arg2[%c2, %c0_18, %c0_19] : memref<5x4x32xf32, #tpu.memory_space<vmem>>, vector<1x4x32xf32>
    %19 = vector.shape_cast %18 : vector<1x4x32xf32> to vector<4x32xf32>
    %cst_20 = arith.constant dense<0.000000e+00> : vector<48x32xf32>
    %20 = tpu.matmul %17, %19, %cst_20 {dimension_numbers = #tpu.dot_dimension_numbers<[1], [0], [0], [1], [0, 0, 1, 1], [], []>} : vector<48x4xf32>, vector<4x32xf32>, vector<48x32xf32> -> vector<48x32xf32>
    %21 = arith.addf %16, %20 : vector<48x32xf32>
    %c9 = arith.constant 9 : index
    %c0_21 = arith.constant 0 : index
    %22 = vector.load %arg9[%c9, %c0_21] : memref<64x4xf32, #tpu.memory_space<vmem>>, vector<48x4xf32>
    %c3 = arith.constant 3 : index
    %c0_22 = arith.constant 0 : index
    %c0_23 = arith.constant 0 : index
    %23 = vector.load %arg2[%c3, %c0_22, %c0_23] : memref<5x4x32xf32, #tpu.memory_space<vmem>>, vector<1x4x32xf32>
    %24 = vector.shape_cast %23 : vector<1x4x32xf32> to vector<4x32xf32>
    %cst_24 = arith.constant dense<0.000000e+00> : vector<48x32xf32>
    %25 = tpu.matmul %22, %24, %cst_24 {dimension_numbers = #tpu.dot_dimension_numbers<[1], [0], [0], [1], [0, 0, 1, 1], [], []>} : vector<48x4xf32>, vector<4x32xf32>, vector<48x32xf32> -> vector<48x32xf32>
    %26 = arith.addf %21, %25 : vector<48x32xf32>
    %c10 = arith.constant 10 : index
    %c0_25 = arith.constant 0 : index
    %27 = vector.load %arg9[%c10, %c0_25] : memref<64x4xf32, #tpu.memory_space<vmem>>, vector<48x4xf32>
    %c4 = arith.constant 4 : index
    %c0_26 = arith.constant 0 : index
    %c0_27 = arith.constant 0 : index
    %28 = vector.load %arg2[%c4, %c0_26, %c0_27] : memref<5x4x32xf32, #tpu.memory_space<vmem>>, vector<1x4x32xf32>
    %29 = vector.shape_cast %28 : vector<1x4x32xf32> to vector<4x32xf32>
    %cst_28 = arith.constant dense<0.000000e+00> : vector<48x32xf32>
    %30 = tpu.matmul %27, %29, %cst_28 {dimension_numbers = #tpu.dot_dimension_numbers<[1], [0], [0], [1], [0, 0, 1, 1], [], []>} : vector<48x4xf32>, vector<4x32xf32>, vector<48x32xf32> -> vector<48x32xf32>
    %31 = arith.addf %26, %30 : vector<48x32xf32>
    %c0_29 = arith.constant 0 : index
    %c0_30 = arith.constant 0 : index
    %32 = vector.load %arg3[%c0_29, %c0_30] : memref<1x32xf32, #tpu.memory_space<vmem>>, vector<1x32xf32>
    %33 = vector.broadcast %32 : vector<1x32xf32> to vector<48x32xf32>
    %34 = arith.addf %31, %33 : vector<48x32xf32>
    %cst_31 = arith.constant 0.000000e+00 : f32
    %35 = vector.broadcast %cst_31 : f32 to vector<48x32xf32>
    %36 = arith.maximumf %34, %35 : vector<48x32xf32>
    %cst_32 = arith.constant 0.000000e+00 : f32
    %37 = vector.broadcast %cst_32 : f32 to vector<8x32xf32>
    %c0_33 = arith.constant 0 : index
    %c0_34 = arith.constant 0 : index
    %38 = vector.load %arg10[%c0_33, %c0_34] : memref<64x32xf32, #tpu.memory_space<vmem>>, vector<8x32xf32>
    tpu.vector_store %arg10[%c0_33, %c0_34], %37 {strides = array<i32>} : memref<64x32xf32, #tpu.memory_space<vmem>>, vector<8x32xf32>,
    %c8_35 = arith.constant 8 : index
    %c0_36 = arith.constant 0 : index
    %39 = vector.load %arg10[%c8_35, %c0_36] : memref<64x32xf32, #tpu.memory_space<vmem>>, vector<48x32xf32>
    tpu.vector_store %arg10[%c8_35, %c0_36], %36 {strides = array<i32>} : memref<64x32xf32, #tpu.memory_space<vmem>>, vector<48x32xf32>,
    %cst_37 = arith.constant 0.000000e+00 : f32
    %40 = vector.broadcast %cst_37 : f32 to vector<8x32xf32>
    %c56_38 = arith.constant 56 : index
    %c0_39 = arith.constant 0 : index
    %41 = vector.load %arg10[%c56_38, %c0_39] : memref<64x32xf32, #tpu.memory_space<vmem>>, vector<8x32xf32>
    tpu.vector_store %arg10[%c56_38, %c0_39], %40 {strides = array<i32>} : memref<64x32xf32, #tpu.memory_space<vmem>>, vector<8x32xf32>,
    %cst_40 = arith.constant 0.000000e+00 : f32
    %42 = vector.broadcast %cst_40 : f32 to vector<2x32xf32>
    %c8_41 = arith.constant 8 : index
    %c0_42 = arith.constant 0 : index
    %43 = vector.load %arg10[%c8_41, %c0_42] : memref<64x32xf32, #tpu.memory_space<vmem>>, vector<2x32xf32>
    tpu.vector_store %arg10[%c8_41, %c0_42], %42 {strides = array<i32>} : memref<64x32xf32, #tpu.memory_space<vmem>>, vector<2x32xf32>,
    %c26 = arith.constant 26 : index
    %c0_43 = arith.constant 0 : index
    %44 = vector.load %arg10[%c26, %c0_43] : memref<64x32xf32, #tpu.memory_space<vmem>>, vector<2x32xf32>
    tpu.vector_store %arg10[%c26, %c0_43], %42 {strides = array<i32>} : memref<64x32xf32, #tpu.memory_space<vmem>>, vector<2x32xf32>,
    %c32 = arith.constant 32 : index
    %c0_44 = arith.constant 0 : index
    %45 = vector.load %arg10[%c32, %c0_44] : memref<64x32xf32, #tpu.memory_space<vmem>>, vector<2x32xf32>
    tpu.vector_store %arg10[%c32, %c0_44], %42 {strides = array<i32>} : memref<64x32xf32, #tpu.memory_space<vmem>>, vector<2x32xf32>,
    %c50 = arith.constant 50 : index
    %c0_45 = arith.constant 0 : index
    %46 = vector.load %arg10[%c50, %c0_45] : memref<64x32xf32, #tpu.memory_space<vmem>>, vector<2x32xf32>
    tpu.vector_store %arg10[%c50, %c0_45], %42 {strides = array<i32>} : memref<64x32xf32, #tpu.memory_space<vmem>>, vector<2x32xf32>,
    %cst_46 = arith.constant 0.000000e+00 : f32
    %47 = vector.broadcast %cst_46 : f32 to vector<48x64xf32>
    %c6_47 = arith.constant 6 : index
    %c0_48 = arith.constant 0 : index
    %48 = vector.load %arg10[%c6_47, %c0_48] : memref<64x32xf32, #tpu.memory_space<vmem>>, vector<48x32xf32>
    %c0_49 = arith.constant 0 : index
    %c0_50 = arith.constant 0 : index
    %c0_51 = arith.constant 0 : index
    %49 = vector.load %arg4[%c0_49, %c0_50, %c0_51] : memref<5x32x64xf32, #tpu.memory_space<vmem>>, vector<1x32x64xf32>
    %50 = vector.shape_cast %49 : vector<1x32x64xf32> to vector<32x64xf32>
    %cst_52 = arith.constant dense<0.000000e+00> : vector<48x64xf32>
    %51 = tpu.matmul %48, %50, %cst_52 {dimension_numbers = #tpu.dot_dimension_numbers<[1], [0], [0], [1], [0, 0, 1, 1], [], []>} : vector<48x32xf32>, vector<32x64xf32>, vector<48x64xf32> -> vector<48x64xf32>
    %52 = arith.addf %47, %51 : vector<48x64xf32>
    %c7_53 = arith.constant 7 : index
    %c0_54 = arith.constant 0 : index
    %53 = vector.load %arg10[%c7_53, %c0_54] : memref<64x32xf32, #tpu.memory_space<vmem>>, vector<48x32xf32>
    %c1_55 = arith.constant 1 : index
    %c0_56 = arith.constant 0 : index
    %c0_57 = arith.constant 0 : index
    %54 = vector.load %arg4[%c1_55, %c0_56, %c0_57] : memref<5x32x64xf32, #tpu.memory_space<vmem>>, vector<1x32x64xf32>
    %55 = vector.shape_cast %54 : vector<1x32x64xf32> to vector<32x64xf32>
    %cst_58 = arith.constant dense<0.000000e+00> : vector<48x64xf32>
    %56 = tpu.matmul %53, %55, %cst_58 {dimension_numbers = #tpu.dot_dimension_numbers<[1], [0], [0], [1], [0, 0, 1, 1], [], []>} : vector<48x32xf32>, vector<32x64xf32>, vector<48x64xf32> -> vector<48x64xf32>
    %57 = arith.addf %52, %56 : vector<48x64xf32>
    %c8_59 = arith.constant 8 : index
    %c0_60 = arith.constant 0 : index
    %58 = vector.load %arg10[%c8_59, %c0_60] : memref<64x32xf32, #tpu.memory_space<vmem>>, vector<48x32xf32>
    %c2_61 = arith.constant 2 : index
    %c0_62 = arith.constant 0 : index
    %c0_63 = arith.constant 0 : index
    %59 = vector.load %arg4[%c2_61, %c0_62, %c0_63] : memref<5x32x64xf32, #tpu.memory_space<vmem>>, vector<1x32x64xf32>
    %60 = vector.shape_cast %59 : vector<1x32x64xf32> to vector<32x64xf32>
    %cst_64 = arith.constant dense<0.000000e+00> : vector<48x64xf32>
    %61 = tpu.matmul %58, %60, %cst_64 {dimension_numbers = #tpu.dot_dimension_numbers<[1], [0], [0], [1], [0, 0, 1, 1], [], []>} : vector<48x32xf32>, vector<32x64xf32>, vector<48x64xf32> -> vector<48x64xf32>
    %62 = arith.addf %57, %61 : vector<48x64xf32>
    %c9_65 = arith.constant 9 : index
    %c0_66 = arith.constant 0 : index
    %63 = vector.load %arg10[%c9_65, %c0_66] : memref<64x32xf32, #tpu.memory_space<vmem>>, vector<48x32xf32>
    %c3_67 = arith.constant 3 : index
    %c0_68 = arith.constant 0 : index
    %c0_69 = arith.constant 0 : index
    %64 = vector.load %arg4[%c3_67, %c0_68, %c0_69] : memref<5x32x64xf32, #tpu.memory_space<vmem>>, vector<1x32x64xf32>
    %65 = vector.shape_cast %64 : vector<1x32x64xf32> to vector<32x64xf32>
    %cst_70 = arith.constant dense<0.000000e+00> : vector<48x64xf32>
    %66 = tpu.matmul %63, %65, %cst_70 {dimension_numbers = #tpu.dot_dimension_numbers<[1], [0], [0], [1], [0, 0, 1, 1], [], []>} : vector<48x32xf32>, vector<32x64xf32>, vector<48x64xf32> -> vector<48x64xf32>
    %67 = arith.addf %62, %66 : vector<48x64xf32>
    %c10_71 = arith.constant 10 : index
    %c0_72 = arith.constant 0 : index
    %68 = vector.load %arg10[%c10_71, %c0_72] : memref<64x32xf32, #tpu.memory_space<vmem>>, vector<48x32xf32>
    %c4_73 = arith.constant 4 : index
    %c0_74 = arith.constant 0 : index
    %c0_75 = arith.constant 0 : index
    %69 = vector.load %arg4[%c4_73, %c0_74, %c0_75] : memref<5x32x64xf32, #tpu.memory_space<vmem>>, vector<1x32x64xf32>
    %70 = vector.shape_cast %69 : vector<1x32x64xf32> to vector<32x64xf32>
    %cst_76 = arith.constant dense<0.000000e+00> : vector<48x64xf32>
    %71 = tpu.matmul %68, %70, %cst_76 {dimension_numbers = #tpu.dot_dimension_numbers<[1], [0], [0], [1], [0, 0, 1, 1], [], []>} : vector<48x32xf32>, vector<32x64xf32>, vector<48x64xf32> -> vector<48x64xf32>
    %72 = arith.addf %67, %71 : vector<48x64xf32>
    %c0_77 = arith.constant 0 : index
    %c0_78 = arith.constant 0 : index
    %73 = vector.load %arg5[%c0_77, %c0_78] : memref<1x64xf32, #tpu.memory_space<vmem>>, vector<1x64xf32>
    %74 = vector.broadcast %73 : vector<1x64xf32> to vector<48x64xf32>
    %75 = arith.addf %72, %74 : vector<48x64xf32>
    %cst_79 = arith.constant 0.000000e+00 : f32
    %76 = vector.broadcast %cst_79 : f32 to vector<48x64xf32>
    %77 = arith.maximumf %75, %76 : vector<48x64xf32>
    %c0_80 = arith.constant 0 : index
    %c0_81 = arith.constant 0 : index
    %78 = vector.load %arg6[%c0_80, %c0_81] : memref<24x64xf32, #tpu.memory_space<vmem>>, vector<24x64xf32>
    %79 = tpu.iota {dimensions = array<i32: 2>} : vector<1x1x2xi32>
    %cst_82 = arith.constant 0.000000e+00 : f32
    %80 = vector.broadcast %cst_82 : f32 to vector<1x1x2xf32>
    %81 = vector.extract_strided_slice %77 {offsets = [0, 0], sizes = [24, 64], strides = [1, 1]} : vector<48x64xf32> to vector<24x64xf32>
    %82 = arith.mulf %81, %78 : vector<24x64xf32>
    %83 = vector.shape_cast %82 : vector<24x64xf32> to vector<1x24x64xf32>
    %cst_83 = arith.constant dense<0.000000e+00> : vector<1xf32>
    %84 = vector.multi_reduction <add>, %83, %cst_83 [1, 2] : vector<1x24x64xf32> to vector<1xf32>
    %85 = vector.shape_cast %84 : vector<1xf32> to vector<1x1x1xf32>
    %86 = vector.extract %85[0, 0, 0] : f32 from vector<1x1x1xf32>
    %c0_i32 = arith.constant 0 : i32
    %87 = vector.broadcast %c0_i32 : i32 to vector<1x1x2xi32>
    %88 = arith.cmpi eq, %79, %87 : vector<1x1x2xi32>
    %cst_84 = arith.constant 0.000000e+00 : f32
    %89 = vector.broadcast %86 : f32 to vector<1x1x2xf32>
    %90 = vector.broadcast %cst_84 : f32 to vector<1x1x2xf32>
    %91 = arith.select %88, %89, %90 : vector<1x1x2xi1>, vector<1x1x2xf32>
    %92 = arith.addf %80, %91 : vector<1x1x2xf32>
    %93 = vector.extract_strided_slice %77 {offsets = [24, 0], sizes = [24, 64], strides = [1, 1]} : vector<48x64xf32> to vector<24x64xf32>
    %94 = arith.mulf %93, %78 : vector<24x64xf32>
    %95 = vector.shape_cast %94 : vector<24x64xf32> to vector<1x24x64xf32>
    %cst_85 = arith.constant dense<0.000000e+00> : vector<1xf32>
    %96 = vector.multi_reduction <add>, %95, %cst_85 [1, 2] : vector<1x24x64xf32> to vector<1xf32>
    %97 = vector.shape_cast %96 : vector<1xf32> to vector<1x1x1xf32>
    %98 = vector.extract %97[0, 0, 0] : f32 from vector<1x1x1xf32>
    %c1_i32 = arith.constant 1 : i32
    %99 = vector.broadcast %c1_i32 : i32 to vector<1x1x2xi32>
    %100 = arith.cmpi eq, %79, %99 : vector<1x1x2xi32>
    %cst_86 = arith.constant 0.000000e+00 : f32
    %101 = vector.broadcast %98 : f32 to vector<1x1x2xf32>
    %102 = vector.broadcast %cst_86 : f32 to vector<1x1x2xf32>
    %103 = arith.select %100, %101, %102 : vector<1x1x2xi1>, vector<1x1x2xf32>
    %104 = arith.addf %92, %103 : vector<1x1x2xf32>
    %c0_87 = arith.constant 0 : index
    %c0_88 = arith.constant 0 : index
    %105 = vector.load %arg7[%c0_87, %c0_88] : memref<1x1xf32, #tpu.memory_space<vmem>>, vector<1x1xf32>
    %106 = vector.shape_cast %105 : vector<1x1xf32> to vector<1x1x1xf32>
    %107 = vector.broadcast %106 : vector<1x1x1xf32> to vector<1x1x2xf32>
    %108 = arith.addf %104, %107 : vector<1x1x2xf32>
    %c0_89 = arith.constant 0 : index
    %c0_90 = arith.constant 0 : index
    %c0_91 = arith.constant 0 : index
    %109 = vector.load %arg8[%c0_89, %c0_90, %c0_91] : memref<1x1x2xf32, #tpu.memory_space<vmem>>, vector<1x1x2xf32>
    tpu.vector_store %arg8[%c0_89, %c0_90, %c0_91], %108 {strides = array<i32>} : memref<1x1x2xf32, #tpu.memory_space<vmem>>, vector<1x1x2xf32>,
    return
  }
  func.func @transform_0(%arg0: i32) -> (i32, i32) {
    %c0_i32 = arith.constant 0 : i32
    %c0_i32_0 = arith.constant 0 : i32
    return %arg0, %c0_i32 : i32, i32
  }
  func.func @transform_1(%arg0: i32) -> (i32, i32, i32) {
    %c0_i32 = arith.constant 0 : i32
    %c0_i32_0 = arith.constant 0 : i32
    %c0_i32_1 = arith.constant 0 : i32
    %c0_i32_2 = arith.constant 0 : i32
    return %c0_i32, %c0_i32_0, %c0_i32_1 : i32, i32, i32
  }
  func.func @transform_2(%arg0: i32) -> (i32, i32) {
    %c0_i32 = arith.constant 0 : i32
    %c0_i32_0 = arith.constant 0 : i32
    %c0_i32_1 = arith.constant 0 : i32
    return %c0_i32, %c0_i32_0 : i32, i32
  }
  func.func @transform_3(%arg0: i32) -> (i32, i32, i32) {
    %c0_i32 = arith.constant 0 : i32
    %c0_i32_0 = arith.constant 0 : i32
    %c0_i32_1 = arith.constant 0 : i32
    %c0_i32_2 = arith.constant 0 : i32
    return %c0_i32, %c0_i32_0, %c0_i32_1 : i32, i32, i32
  }
  func.func @transform_4(%arg0: i32) -> (i32, i32) {
    %c0_i32 = arith.constant 0 : i32
    %c0_i32_0 = arith.constant 0 : i32
    %c0_i32_1 = arith.constant 0 : i32
    return %c0_i32, %c0_i32_0 : i32, i32
  }
  func.func @transform_5(%arg0: i32) -> (i32, i32) {
    %c0_i32 = arith.constant 0 : i32
    %c0_i32_0 = arith.constant 0 : i32
    %c0_i32_1 = arith.constant 0 : i32
    return %c0_i32, %c0_i32_0 : i32, i32
  }
  func.func @transform_6(%arg0: i32) -> (i32, i32) {
    %c0_i32 = arith.constant 0 : i32
    %c0_i32_0 = arith.constant 0 : i32
    %c0_i32_1 = arith.constant 0 : i32
    return %c0_i32, %c0_i32_0 : i32, i32
  }
  func.func @transform_7(%arg0: i32) -> (i32, i32, i32) {
    %c0_i32 = arith.constant 0 : i32
    %c0_i32_0 = arith.constant 0 : i32
    %c0_i32_1 = arith.constant 0 : i32
    return %arg0, %c0_i32, %c0_i32_0 : i32, i32, i32
  }
}

</mosaic_0001>

<llo_original>
// kernel: tpu_custom_call.1
$region0: #{tpu_custom_call.1}
  #allocation0 [shape = 'u32[]', space=smem, size = 0x4, offset = 0x4, fixed_abs, tag = 'smem constant byte address 0x4 - core index']
  #allocation1 [shape = 'u32[144,128]{1,0:T(1,128)}', space=vmem, size = 0x12000, scoped, tag = 'internal scratch']
  #allocation2 [shape = 'f32[64,4]{1,0:T(8,128)}', space=vmem, size = 0x8000, scoped, tag = 'scratch operand']
  #allocation3 [shape = 'f32[64,32]{1,0:T(8,128)}', space=vmem, size = 0x8000, scoped, tag = 'scratch operand']
  #allocation4 [shape = 'f32[1,1]{1,0:T(1,128)S(1)}', space=vmem, size = 0x200, scoped, tag = 'scoped memory for tpu_custom_call.1']
  %s0 = inlined_call_operand.vmem [shape: f32[48,4], index: 0, kind: input, shape index: {}]
  %s1 = inlined_call_operand.vmem [shape: f32[5,4,32], index: 1, kind: input, shape index: {}]
  %s2 = inlined_call_operand.vmem [shape: f32[1,32], index: 2, kind: input, shape index: {}]
  %s3 = inlined_call_operand.hbm [shape: f32[5,32,64], index: 3, kind: input, shape index: {}]
  %s4 = inlined_call_operand.vmem [shape: f32[1,64], index: 4, kind: input, shape index: {}]
  %s5 = inlined_call_operand.vmem [shape: f32[24,64], index: 5, kind: input, shape index: {}]
  %s6 = inlined_call_operand.<no memory space> [shape: f32[1,1], index: 6, kind: input, shape index: {}]
  %s7 = inlined_call_operand.hbm [shape: f32[1,1,2], index: 7, kind: output, shape index: {}]
  %s8 = sld [smem:[#allocation0]]
  $region42: #{tpu_custom_call.1} parent=0
    _
  %s10 = ssub.s32 1, %s8
  %s11 = scalar_select 0, %s10, %s8
  %v12 = vstv %s6
  %13 = vst [vmem:[#allocation4] sm:$0x1] %v12
  $region1: #{tpu_custom_call.1} parent=0
    #allocation5 [shape = 'u8[81920]{0}', space=vmem, size = 0x14000, scoped, tag = 'input window, operand 3, single buffered']
    #allocation6 [shape = 's32[1]{0}', space=sflag, size = 0x4, scoped, tag = 'scoped memory for tpu_custom_call.1']
    #allocation7 [shape = 's32[1]{0}', space=sflag, size = 0x4, scoped, tag = 'scoped memory for tpu_custom_call.1']
    #allocation8 [shape = 'u8[512]{0}', space=vmem, size = 0x400, scoped, tag = 'output window, operand 0, single buffered']
    %14 = vsyncpa [#allocation6], 0
    %15 = vsyncpa [#allocation7], 0
    // Predicated region
    $region2: #{tpu_custom_call.1} parent=1 // pred_check
      _
    $region3: #{tpu_custom_call.1} parent=1 // pred_check_branch
      %17 = sbr.rel (0) target = $region5
    $region4: #{tpu_custom_call.1} parent=1 // pred_region
      _
    $region5: #{tpu_custom_call.1} parent=1 // pred_fallthru
      _
    // Predicated region
    $region6: #{tpu_custom_call.1} parent=1 // pred_check
      _
    $region7: #{tpu_custom_call.1} parent=1 // pred_check_branch
      %19 = sbr.rel (0) target = $region9
    $region8: #{tpu_custom_call.1} parent=1 // pred_region
      _
    $region9: #{tpu_custom_call.1} parent=1 // pred_fallthru
      _
    // Predicated region
    $region10: #{tpu_custom_call.1} parent=1 // pred_check
      _
    $region11: #{tpu_custom_call.1} parent=1 // pred_check_branch
      %21 = sbr.rel (0) target = $region13
    $region12: #{tpu_custom_call.1} parent=1 // pred_region
      _
    $region13: #{tpu_custom_call.1} parent=1 // pred_fallthru
      _
    // Predicated region
    $region14: #{tpu_custom_call.1} parent=1 // pred_check
      _
    $region15: #{tpu_custom_call.1} parent=1 // pred_check_branch
      %23 = sbr.rel (0) target = $region17
    $region16: #{tpu_custom_call.1} parent=1 // pred_region
      %s25 = ssub.s32 2560, 2560
      %26 = vsyncadd [#allocation6], %s25
      %s27 = sshll.u32 [#allocation5], 4
      %s28 = int_to_ptr.vmem [resolvable:$true] %s27
      %33 = dma.hbm_to_vmem [thread:$0]  %s3, 2560, %s28, [#allocation6], 128, 128, 8
    $region17: #{tpu_custom_call.1} parent=1 // pred_fallthru
      _
    // Predicated region
    $region18: #{tpu_custom_call.1} parent=1 // pred_check
      _
    $region19: #{tpu_custom_call.1} parent=1 // pred_check_branch
      %35 = sbr.rel (0) target = $region21
    $region20: #{tpu_custom_call.1} parent=1 // pred_region
      _
    $region21: #{tpu_custom_call.1} parent=1 // pred_fallthru
      _
    // Predicated region
    $region22: #{tpu_custom_call.1} parent=1 // pred_check
      _
    $region23: #{tpu_custom_call.1} parent=1 // pred_check_branch
      %37 = sbr.rel (0) target = $region25
    $region24: #{tpu_custom_call.1} parent=1 // pred_region
      _
    $region25: #{tpu_custom_call.1} parent=1 // pred_fallthru
      _
    // Predicated region
    $region26: #{tpu_custom_call.1} parent=1 // pred_check
      _
    $region27: #{tpu_custom_call.1} parent=1 // pred_check_branch
      %39 = sbr.rel (0) target = $region29
    $region28: #{tpu_custom_call.1} parent=1 // pred_region
      _
    $region29: #{tpu_custom_call.1} parent=1 // pred_fallthru
      _
    // Predicated region
    $region30: #{tpu_custom_call.1} parent=1 // pred_check
      _
    $region31: #{tpu_custom_call.1} parent=1 // pred_check_branch
      %41 = sbr.rel (0) target = $region33
    $region32: #{tpu_custom_call.1} parent=1 // pred_region
      %42 = dma.done [#allocation6], 2560
    $region33: #{tpu_custom_call.1} parent=1 // pred_fallthru
      _
    %vm43 = vcmask 31744
    %44 = vst.msk [vmem:[#allocation2] sm:$0xff] %vm43, 0.0
    %v45 = vld [vmem:[%s0] sm:$0xff]
    %v46 = vld [vmem:[%s0 + $0x8] sm:$0xff]
    %v47 = vld [vmem:[%s0 + $0x10] sm:$0xff]
    %v48 = vld [vmem:[%s0 + $0x18] sm:$0xff]
    %v49 = vld [vmem:[%s0 + $0x20] sm:$0xff]
    %v50 = vld [vmem:[%s0 + $0x28] sm:$0xff]
    %51 = vst.msk [vmem:[#allocation2 + $0x8] sm:$0xff] %vm43, %v45
    %52 = vst.msk [vmem:[#allocation2 + $0x10] sm:$0xff] %vm43, %v46
    %53 = vst.msk [vmem:[#allocation2 + $0x18] sm:$0xff] %vm43, %v47
    %54 = vst.msk [vmem:[#allocation2 + $0x20] sm:$0xff] %vm43, %v48
    %55 = vst.msk [vmem:[#allocation2 + $0x28] sm:$0xff] %vm43, %v49
    %56 = vst.msk [vmem:[#allocation2 + $0x30] sm:$0xff] %vm43, %v50
    %57 = vst.msk [vmem:[#allocation2 + $0x38] sm:$0xff] %vm43, 0.0
    %v58 = vld [vmem:[#allocation2 + $0x6] sm:$0xff]
    %v59 = vld [vmem:[#allocation2 + $0xe] sm:$0xff]
    %v60 = vld [vmem:[#allocation2 + $0x16] sm:$0xff]
    %v61 = vld [vmem:[#allocation2 + $0x1e] sm:$0xff]
    %v62 = vld [vmem:[#allocation2 + $0x26] sm:$0xff]
    %v63 = vld [vmem:[#allocation2 + $0x2e] sm:$0xff]
    %v64 = vld [vmem:[%s1] sm:$0xf]
    %v65 = vld [vmem:[#allocation2 + $0x7] sm:$0xff]
    %v66 = vld [vmem:[#allocation2 + $0xf] sm:$0xff]
    %v67 = vld [vmem:[#allocation2 + $0x17] sm:$0xff]
    %v68 = vld [vmem:[#allocation2 + $0x1f] sm:$0xff]
    %v69 = vld [vmem:[#allocation2 + $0x27] sm:$0xff]
    %v70 = vld [vmem:[#allocation2 + $0x2f] sm:$0xff]
    %s71 = scalar_lea.vmem %s1, 4
    %v72 = vld [vmem:[%s71] sm:$0xf]
    %v74 = vsel %vm43, %v65, 0
    %v77 = vsel %vm43, %v66, 0
    %v80 = vsel %vm43, %v67, 0
    %v83 = vsel %vm43, %v68, 0
    %v86 = vsel %vm43, %v69, 0
    %v89 = vsel %vm43, %v70, 0
    %vm91 = vcmask 1043456
    %v93 = vsel %vm91, %v72, 0
    %95 = vmatprep.subr.mxu0 0.0
    %96 = vmatpush1.msra.mxu0 0.0
    %97 = vmatprep.subr.mxu0 0.0
    %98 = vmatpush1.msra.mxu0 0.0
    %99 = vmatprep.subr.mxu0 0.0
    %100 = vmatpush1.msra.mxu0 0.0
    %101 = vmatprep.subr.mxu0 0.0
    %102 = vmatpush1.msra.mxu0 0.0
    %103 = vmatprep.subr.mxu0 0.0
    %104 = vmatpush1.msra.mxu0 0.0
    %105 = vmatprep.subr.mxu0 0.0
    %106 = vmatpush1.msra.mxu0 0.0
    %107 = vmatprep.subr.mxu0 0.0
    %108 = vmatpush1.msra.mxu0 0.0
    %109 = vmatprep.subr.mxu0 0.0
    %110 = vmatpush1.msra.mxu0 0.0
    %111 = vmatprep.subr.mxu0 0.0
    %112 = vmatpush1.msra.mxu0 0.0
    %113 = vmatprep.subr.mxu0 0.0
    %114 = vmatpush1.msra.mxu0 0.0
    %115 = vmatprep.subr.mxu0 0.0
    %116 = vmatpush1.msra.mxu0 0.0
    %117 = vmatprep.subr.mxu0 0.0
    %118 = vmatpush1.msra.mxu0 0.0
    %119 = vmatprep.subr.mxu0 0.0
    %120 = vmatpush1.msra.mxu0 0.0
    %121 = vmatprep.subr.mxu0 0.0
    %122 = vmatpush1.msra.mxu0 0.0
    %123 = vmatprep.subr.mxu0 0.0
    %124 = vmatpush1.msra.mxu0 0.0
    %125 = vmatprep.subr.mxu0 0.0
    %126 = vmatpush1.msra.mxu0 %v93
    %127 = vmatprep.subr.mxu0 0.0
    %128 = vmatpush2.msra.mxu0 0.0
    %129 = vmatprep.subr.mxu0 0.0
    %130 = vmatpush2.msra.mxu0 0.0
    %131 = vmatprep.subr.mxu0 0.0
    %132 = vmatpush2.msra.mxu0 0.0
    %133 = vmatprep.subr.mxu0 0.0
    %134 = vmatpush2.msra.mxu0 0.0
    %135 = vmatprep.subr.mxu0 0.0
    %136 = vmatpush2.msra.mxu0 0.0
    %137 = vmatprep.subr.mxu0 0.0
    %138 = vmatpush2.msra.mxu0 0.0
    %139 = vmatprep.subr.mxu0 0.0
    %140 = vmatpush2.msra.mxu0 0.0
    %141 = vmatprep.subr.mxu0 0.0
    %142 = vmatpush2.msra.mxu0 0.0
    %143 = vmatprep.subr.mxu0 0.0
    %144 = vmatpush2.msra.mxu0 0.0
    %145 = vmatprep.subr.mxu0 0.0
    %146 = vmatpush2.msra.mxu0 0.0
    %147 = vmatprep.subr.mxu0 0.0
    %148 = vmatpush2.msra.mxu0 0.0
    %149 = vmatprep.subr.mxu0 0.0
    %150 = vmatpush2.msra.mxu0 0.0
    %151 = vmatprep.subr.mxu0 0.0
    %152 = vmatpush2.msra.mxu0 0.0
    %153 = vmatprep.subr.mxu0 0.0
    %154 = vmatpush2.msra.mxu0 0.0
    %155 = vmatprep.subr.mxu0 0.0
    %156 = vmatpush2.msra.mxu0 0.0
    %157 = vmatprep.subr.mxu0 0.0
    %158 = vmatpush2.msra.mxu0 0.0
    %159 = vmatprep.mubr.f32.mxu0 0.0
    %160 = vmatmul.mubr.f32.gmra.mxu0 %v74
    %v161 = vpop.f32.mrf.mxu0
    %v162 = vadd.f32 0.0, %v161
    %v163 = vpop.f32.mrf.mxu0
    %164 = vmatprep.mubr.f32.mxu0 0.0
    %165 = vmatmul.mubr.f32.gmra.mxu0 %v77
    %v166 = vpop.f32.mrf.mxu0
    %v167 = vadd.f32 0.0, %v166
    %v168 = vpop.f32.mrf.mxu0
    %169 = vmatprep.mubr.f32.mxu0 0.0
    %170 = vmatmul.mubr.f32.gmra.mxu0 %v80
    %v171 = vpop.f32.mrf.mxu0
    %v172 = vadd.f32 0.0, %v171
    %v173 = vpop.f32.mrf.mxu0
    %174 = vmatprep.mubr.f32.mxu0 0.0
    %175 = vmatmul.mubr.f32.gmra.mxu0 %v83
    %v176 = vpop.f32.mrf.mxu0
    %v177 = vadd.f32 0.0, %v176
    %v178 = vpop.f32.mrf.mxu0
    %179 = vmatprep.mubr.f32.mxu0 0.0
    %180 = vmatmul.mubr.f32.gmra.mxu0 %v86
    %v181 = vpop.f32.mrf.mxu0
    %v182 = vadd.f32 0.0, %v181
    %v183 = vpop.f32.mrf.mxu0
    %184 = vmatprep.mubr.f32.mxu0 0.0
    %185 = vmatmul.mubr.f32.gmra.mxu0 %v89
    %v186 = vpop.f32.mrf.mxu0
    %v187 = vadd.f32 0.0, %v186
    %v188 = vpop.f32.mrf.mxu0
    %189 = vdwg.mxu0
    %v191 = vsel %vm43, %v58, 0
    %v194 = vsel %vm43, %v59, 0
    %v197 = vsel %vm43, %v60, 0
    %v200 = vsel %vm43, %v61, 0
    %v203 = vsel %vm43, %v62, 0
    %v206 = vsel %vm43, %v63, 0
    %v209 = vsel %vm91, %v64, 0
    %211 = vmatprep.subr.mxu0 0.0
    %212 = vmatpush1.msra.mxu0 0.0
    %213 = vmatprep.subr.mxu0 0.0
    %214 = vmatpush1.msra.mxu0 0.0
    %215 = vmatprep.subr.mxu0 0.0
    %216 = vmatpush1.msra.mxu0 0.0
    %217 = vmatprep.subr.mxu0 0.0
    %218 = vmatpush1.msra.mxu0 0.0
    %219 = vmatprep.subr.mxu0 0.0
    %220 = vmatpush1.msra.mxu0 0.0
    %221 = vmatprep.subr.mxu0 0.0
    %222 = vmatpush1.msra.mxu0 0.0
    %223 = vmatprep.subr.mxu0 0.0
    %224 = vmatpush1.msra.mxu0 0.0
    %225 = vmatprep.subr.mxu0 0.0
    %226 = vmatpush1.msra.mxu0 0.0
    %227 = vmatprep.subr.mxu0 0.0
    %228 = vmatpush1.msra.mxu0 0.0
    %229 = vmatprep.subr.mxu0 0.0
    %230 = vmatpush1.msra.mxu0 0.0
    %231 = vmatprep.subr.mxu0 0.0
    %232 = vmatpush1.msra.mxu0 0.0
    %233 = vmatprep.subr.mxu0 0.0
    %234 = vmatpush1.msra.mxu0 0.0
    %235 = vmatprep.subr.mxu0 0.0
    %236 = vmatpush1.msra.mxu0 0.0
    %237 = vmatprep.subr.mxu0 0.0
    %238 = vmatpush1.msra.mxu0 0.0
    %239 = vmatprep.subr.mxu0 0.0
    %240 = vmatpush1.msra.mxu0 0.0
    %241 = vmatprep.subr.mxu0 0.0
    %242 = vmatpush1.msra.mxu0 %v209
    %243 = vmatprep.subr.mxu0 0.0
    %244 = vmatpush2.msra.mxu0 0.0
    %245 = vmatprep.subr.mxu0 0.0
    %246 = vmatpush2.msra.mxu0 0.0
    %247 = vmatprep.subr.mxu0 0.0
    %248 = vmatpush2.msra.mxu0 0.0
    %249 = vmatprep.subr.mxu0 0.0
    %250 = vmatpush2.msra.mxu0 0.0
    %251 = vmatprep.subr.mxu0 0.0
    %252 = vmatpush2.msra.mxu0 0.0
    %253 = vmatprep.subr.mxu0 0.0
    %254 = vmatpush2.msra.mxu0 0.0
    %255 = vmatprep.subr.mxu0 0.0
    %256 = vmatpush2.msra.mxu0 0.0
    %257 = vmatprep.subr.mxu0 0.0
    %258 = vmatpush2.msra.mxu0 0.0
    %259 = vmatprep.subr.mxu0 0.0
    %260 = vmatpush2.msra.mxu0 0.0
    %261 = vmatprep.subr.mxu0 0.0
    %262 = vmatpush2.msra.mxu0 0.0
    %263 = vmatprep.subr.mxu0 0.0
    %264 = vmatpush2.msra.mxu0 0.0
    %265 = vmatprep.subr.mxu0 0.0
    %266 = vmatpush2.msra.mxu0 0.0
    %267 = vmatprep.subr.mxu0 0.0
    %268 = vmatpush2.msra.mxu0 0.0
    %269 = vmatprep.subr.mxu0 0.0
    %270 = vmatpush2.msra.mxu0 0.0
    %271 = vmatprep.subr.mxu0 0.0
    %272 = vmatpush2.msra.mxu0 0.0
    %273 = vmatprep.subr.mxu0 0.0
    %274 = vmatpush2.msra.mxu0 0.0
    %275 = vmatprep.mubr.f32.mxu0 0.0
    %276 = vmatmul.mubr.f32.gmra.mxu0 %v191
    %v277 = vpop.f32.mrf.mxu0
    %v278 = vadd.f32 %v162, %v277
    %v279 = vpop.f32.mrf.mxu0
    %280 = vmatprep.mubr.f32.mxu0 0.0
    %281 = vmatmul.mubr.f32.gmra.mxu0 %v194
    %v282 = vpop.f32.mrf.mxu0
    %v283 = vadd.f32 %v167, %v282
    %v284 = vpop.f32.mrf.mxu0
    %285 = vmatprep.mubr.f32.mxu0 0.0
    %286 = vmatmul.mubr.f32.gmra.mxu0 %v197
    %v287 = vpop.f32.mrf.mxu0
    %v288 = vadd.f32 %v172, %v287
    %v289 = vpop.f32.mrf.mxu0
    %290 = vmatprep.mubr.f32.mxu0 0.0
    %291 = vmatmul.mubr.f32.gmra.mxu0 %v200
    %v292 = vpop.f32.mrf.mxu0
    %v293 = vadd.f32 %v177, %v292
    %v294 = vpop.f32.mrf.mxu0
    %295 = vmatprep.mubr.f32.mxu0 0.0
    %296 = vmatmul.mubr.f32.gmra.mxu0 %v203
    %v297 = vpop.f32.mrf.mxu0
    %v298 = vadd.f32 %v182, %v297
    %v299 = vpop.f32.mrf.mxu0
    %300 = vmatprep.mubr.f32.mxu0 0.0
    %301 = vmatmul.mubr.f32.gmra.mxu0 %v206
    %v302 = vpop.f32.mrf.mxu0
    %v303 = vadd.f32 %v187, %v302
    %v304 = vpop.f32.mrf.mxu0
    %305 = vdwg.mxu0
    %v306 = vld [vmem:[#allocation2 + $0x8] sm:$0xff]
    %v307 = vld [vmem:[#allocation2 + $0x10] sm:$0xff]
    %v308 = vld [vmem:[#allocation2 + $0x18] sm:$0xff]
    %v309 = vld [vmem:[#allocation2 + $0x20] sm:$0xff]
    %v310 = vld [vmem:[#allocation2 + $0x28] sm:$0xff]
    %v311 = vld [vmem:[#allocation2 + $0x30] sm:$0xff]
    %s312 = scalar_lea.vmem %s1, 8
    %v313 = vld [vmem:[%s312] sm:$0xf]
    %v315 = vsel %vm43, %v306, 0
    %v318 = vsel %vm43, %v307, 0
    %v321 = vsel %vm43, %v308, 0
    %v324 = vsel %vm43, %v309, 0
    %v327 = vsel %vm43, %v310, 0
    %v330 = vsel %vm43, %v311, 0
    %v333 = vsel %vm91, %v313, 0
    %335 = vmatprep.subr.mxu0 0.0
    %336 = vmatpush1.msra.mxu0 0.0
    %337 = vmatprep.subr.mxu0 0.0
    %338 = vmatpush1.msra.mxu0 0.0
    %339 = vmatprep.subr.mxu0 0.0
    %340 = vmatpush1.msra.mxu0 0.0
    %341 = vmatprep.subr.mxu0 0.0
    %342 = vmatpush1.msra.mxu0 0.0
    %343 = vmatprep.subr.mxu0 0.0
    %344 = vmatpush1.msra.mxu0 0.0
    %345 = vmatprep.subr.mxu0 0.0
    %346 = vmatpush1.msra.mxu0 0.0
    %347 = vmatprep.subr.mxu0 0.0
    %348 = vmatpush1.msra.mxu0 0.0
    %349 = vmatprep.subr.mxu0 0.0
    %350 = vmatpush1.msra.mxu0 0.0
    %351 = vmatprep.subr.mxu0 0.0
    %352 = vmatpush1.msra.mxu0 0.0
    %353 = vmatprep.subr.mxu0 0.0
    %354 = vmatpush1.msra.mxu0 0.0
    %355 = vmatprep.subr.mxu0 0.0
    %356 = vmatpush1.msra.mxu0 0.0
    %357 = vmatprep.subr.mxu0 0.0
    %358 = vmatpush1.msra.mxu0 0.0
    %359 = vmatprep.subr.mxu0 0.0
    %360 = vmatpush1.msra.mxu0 0.0
    %361 = vmatprep.subr.mxu0 0.0
    %362 = vmatpush1.msra.mxu0 0.0
    %363 = vmatprep.subr.mxu0 0.0
    %364 = vmatpush1.msra.mxu0 0.0
    %365 = vmatprep.subr.mxu0 0.0
    %366 = vmatpush1.msra.mxu0 %v333
    %367 = vmatprep.subr.mxu0 0.0
    %368 = vmatpush2.msra.mxu0 0.0
    %369 = vmatprep.subr.mxu0 0.0
    %370 = vmatpush2.msra.mxu0 0.0
    %371 = vmatprep.subr.mxu0 0.0
    %372 = vmatpush2.msra.mxu0 0.0
    %373 = vmatprep.subr.mxu0 0.0
    %374 = vmatpush2.msra.mxu0 0.0
    %375 = vmatprep.subr.mxu0 0.0
    %376 = vmatpush2.msra.mxu0 0.0
    %377 = vmatprep.subr.mxu0 0.0
    %378 = vmatpush2.msra.mxu0 0.0
    %379 = vmatprep.subr.mxu0 0.0
    %380 = vmatpush2.msra.mxu0 0.0
    %381 = vmatprep.subr.mxu0 0.0
    %382 = vmatpush2.msra.mxu0 0.0
    %383 = vmatprep.subr.mxu0 0.0
    %384 = vmatpush2.msra.mxu0 0.0
    %385 = vmatprep.subr.mxu0 0.0
    %386 = vmatpush2.msra.mxu0 0.0
    %387 = vmatprep.subr.mxu0 0.0
    %388 = vmatpush2.msra.mxu0 0.0
    %389 = vmatprep.subr.mxu0 0.0
    %390 = vmatpush2.msra.mxu0 0.0
    %391 = vmatprep.subr.mxu0 0.0
    %392 = vmatpush2.msra.mxu0 0.0
    %393 = vmatprep.subr.mxu0 0.0
    %394 = vmatpush2.msra.mxu0 0.0
    %395 = vmatprep.subr.mxu0 0.0
    %396 = vmatpush2.msra.mxu0 0.0
    %397 = vmatprep.subr.mxu0 0.0
    %398 = vmatpush2.msra.mxu0 0.0
    %399 = vmatprep.mubr.f32.mxu0 0.0
    %400 = vmatmul.mubr.f32.gmra.mxu0 %v315
    %v401 = vpop.f32.mrf.mxu0
    %v402 = vadd.f32 0.0, %v401
    %v403 = vpop.f32.mrf.mxu0
    %404 = vmatprep.mubr.f32.mxu0 0.0
    %405 = vmatmul.mubr.f32.gmra.mxu0 %v318
    %v406 = vpop.f32.mrf.mxu0
    %v407 = vadd.f32 0.0, %v406
    %v408 = vpop.f32.mrf.mxu0
    %409 = vmatprep.mubr.f32.mxu0 0.0
    %410 = vmatmul.mubr.f32.gmra.mxu0 %v321
    %v411 = vpop.f32.mrf.mxu0
    %v412 = vadd.f32 0.0, %v411
    %v413 = vpop.f32.mrf.mxu0
    %414 = vmatprep.mubr.f32.mxu0 0.0
    %415 = vmatmul.mubr.f32.gmra.mxu0 %v324
    %v416 = vpop.f32.mrf.mxu0
    %v417 = vadd.f32 0.0, %v416
    %v418 = vpop.f32.mrf.mxu0
    %419 = vmatprep.mubr.f32.mxu0 0.0
    %420 = vmatmul.mubr.f32.gmra.mxu0 %v327
    %v421 = vpop.f32.mrf.mxu0
    %v422 = vadd.f32 0.0, %v421
    %v423 = vpop.f32.mrf.mxu0
    %424 = vmatprep.mubr.f32.mxu0 0.0
    %425 = vmatmul.mubr.f32.gmra.mxu0 %v330
    %v426 = vpop.f32.mrf.mxu0
    %v427 = vadd.f32 0.0, %v426
    %v428 = vpop.f32.mrf.mxu0
    %429 = vdwg.mxu0
    %v430 = vadd.f32 %v278, %v402
    %v431 = vadd.f32 %v283, %v407
    %v432 = vadd.f32 %v288, %v412
    %v433 = vadd.f32 %v293, %v417
    %v434 = vadd.f32 %v298, %v422
    %v435 = vadd.f32 %v303, %v427
    %v436 = vld [vmem:[#allocation2 + $0x9] sm:$0xff]
    %v437 = vld [vmem:[#allocation2 + $0x11] sm:$0xff]
    %v438 = vld [vmem:[#allocation2 + $0x19] sm:$0xff]
    %v439 = vld [vmem:[#allocation2 + $0x21] sm:$0xff]
    %v440 = vld [vmem:[#allocation2 + $0x29] sm:$0xff]
    %v441 = vld [vmem:[#allocation2 + $0x31] sm:$0xff]
    %s442 = scalar_lea.vmem %s1, 12
    %v443 = vld [vmem:[%s442] sm:$0xf]
    %v445 = vsel %vm43, %v436, 0
    %v448 = vsel %vm43, %v437, 0
    %v451 = vsel %vm43, %v438, 0
    %v454 = vsel %vm43, %v439, 0
    %v457 = vsel %vm43, %v440, 0
    %v460 = vsel %vm43, %v441, 0
    %v463 = vsel %vm91, %v443, 0
    %465 = vmatprep.subr.mxu0 0.0
    %466 = vmatpush1.msra.mxu0 0.0
    %467 = vmatprep.subr.mxu0 0.0
    %468 = vmatpush1.msra.mxu0 0.0
    %469 = vmatprep.subr.mxu0 0.0
    %470 = vmatpush1.msra.mxu0 0.0
    %471 = vmatprep.subr.mxu0 0.0
    %472 = vmatpush1.msra.mxu0 0.0
    %473 = vmatprep.subr.mxu0 0.0
    %474 = vmatpush1.msra.mxu0 0.0
    %475 = vmatprep.subr.mxu0 0.0
    %476 = vmatpush1.msra.mxu0 0.0
    %477 = vmatprep.subr.mxu0 0.0
    %478 = vmatpush1.msra.mxu0 0.0
    %479 = vmatprep.subr.mxu0 0.0
    %480 = vmatpush1.msra.mxu0 0.0
    %481 = vmatprep.subr.mxu0 0.0
    %482 = vmatpush1.msra.mxu0 0.0
    %483 = vmatprep.subr.mxu0 0.0
    %484 = vmatpush1.msra.mxu0 0.0
    %485 = vmatprep.subr.mxu0 0.0
    %486 = vmatpush1.msra.mxu0 0.0
    %487 = vmatprep.subr.mxu0 0.0
    %488 = vmatpush1.msra.mxu0 0.0
    %489 = vmatprep.subr.mxu0 0.0
    %490 = vmatpush1.msra.mxu0 0.0
    %491 = vmatprep.subr.mxu0 0.0
    %492 = vmatpush1.msra.mxu0 0.0
    %493 = vmatprep.subr.mxu0 0.0
    %494 = vmatpush1.msra.mxu0 0.0
    %495 = vmatprep.subr.mxu0 0.0
    %496 = vmatpush1.msra.mxu0 %v463
    %497 = vmatprep.subr.mxu0 0.0
    %498 = vmatpush2.msra.mxu0 0.0
    %499 = vmatprep.subr.mxu0 0.0
    %500 = vmatpush2.msra.mxu0 0.0
    %501 = vmatprep.subr.mxu0 0.0
    %502 = vmatpush2.msra.mxu0 0.0
    %503 = vmatprep.subr.mxu0 0.0
    %504 = vmatpush2.msra.mxu0 0.0
    %505 = vmatprep.subr.mxu0 0.0
    %506 = vmatpush2.msra.mxu0 0.0
    %507 = vmatprep.subr.mxu0 0.0
    %508 = vmatpush2.msra.mxu0 0.0
    %509 = vmatprep.subr.mxu0 0.0
    %510 = vmatpush2.msra.mxu0 0.0
    %511 = vmatprep.subr.mxu0 0.0
    %512 = vmatpush2.msra.mxu0 0.0
    %513 = vmatprep.subr.mxu0 0.0
    %514 = vmatpush2.msra.mxu0 0.0
    %515 = vmatprep.subr.mxu0 0.0
    %516 = vmatpush2.msra.mxu0 0.0
    %517 = vmatprep.subr.mxu0 0.0
    %518 = vmatpush2.msra.mxu0 0.0
    %519 = vmatprep.subr.mxu0 0.0
    %520 = vmatpush2.msra.mxu0 0.0
    %521 = vmatprep.subr.mxu0 0.0
    %522 = vmatpush2.msra.mxu0 0.0
    %523 = vmatprep.subr.mxu0 0.0
    %524 = vmatpush2.msra.mxu0 0.0
    %525 = vmatprep.subr.mxu0 0.0
    %526 = vmatpush2.msra.mxu0 0.0
    %527 = vmatprep.subr.mxu0 0.0
    %528 = vmatpush2.msra.mxu0 0.0
    %529 = vmatprep.mubr.f32.mxu0 0.0
    %530 = vmatmul.mubr.f32.gmra.mxu0 %v445
    %v531 = vpop.f32.mrf.mxu0
    %v532 = vadd.f32 0.0, %v531
    %v533 = vpop.f32.mrf.mxu0
    %534 = vmatprep.mubr.f32.mxu0 0.0
    %535 = vmatmul.mubr.f32.gmra.mxu0 %v448
    %v536 = vpop.f32.mrf.mxu0
    %v537 = vadd.f32 0.0, %v536
    %v538 = vpop.f32.mrf.mxu0
    %539 = vmatprep.mubr.f32.mxu0 0.0
    %540 = vmatmul.mubr.f32.gmra.mxu0 %v451
    %v541 = vpop.f32.mrf.mxu0
    %v542 = vadd.f32 0.0, %v541
    %v543 = vpop.f32.mrf.mxu0
    %544 = vmatprep.mubr.f32.mxu0 0.0
    %545 = vmatmul.mubr.f32.gmra.mxu0 %v454
    %v546 = vpop.f32.mrf.mxu0
    %v547 = vadd.f32 0.0, %v546
    %v548 = vpop.f32.mrf.mxu0
    %549 = vmatprep.mubr.f32.mxu0 0.0
    %550 = vmatmul.mubr.f32.gmra.mxu0 %v457
    %v551 = vpop.f32.mrf.mxu0
    %v552 = vadd.f32 0.0, %v551
    %v553 = vpop.f32.mrf.mxu0
    %554 = vmatprep.mubr.f32.mxu0 0.0
    %555 = vmatmul.mubr.f32.gmra.mxu0 %v460
    %v556 = vpop.f32.mrf.mxu0
    %v557 = vadd.f32 0.0, %v556
    %v558 = vpop.f32.mrf.mxu0
    %559 = vdwg.mxu0
    %v560 = vadd.f32 %v430, %v532
    %v561 = vadd.f32 %v431, %v537
    %v562 = vadd.f32 %v432, %v542
    %v563 = vadd.f32 %v433, %v547
    %v564 = vadd.f32 %v434, %v552
    %v565 = vadd.f32 %v435, %v557
    %v566 = vld [vmem:[#allocation2 + $0xa] sm:$0xff]
    %v567 = vld [vmem:[#allocation2 + $0x12] sm:$0xff]
    %v568 = vld [vmem:[#allocation2 + $0x1a] sm:$0xff]
    %v569 = vld [vmem:[#allocation2 + $0x22] sm:$0xff]
    %v570 = vld [vmem:[#allocation2 + $0x2a] sm:$0xff]
    %v571 = vld [vmem:[#allocation2 + $0x32] sm:$0xff]
    %s572 = scalar_lea.vmem %s1, 16
    %v573 = vld [vmem:[%s572] sm:$0xf]
    %v575 = vsel %vm43, %v566, 0
    %v578 = vsel %vm43, %v567, 0
    %v581 = vsel %vm43, %v568, 0
    %v584 = vsel %vm43, %v569, 0
    %v587 = vsel %vm43, %v570, 0
    %v590 = vsel %vm43, %v571, 0
    %v593 = vsel %vm91, %v573, 0
    %595 = vmatprep.subr.mxu0 0.0
    %596 = vmatpush1.msra.mxu0 0.0
    %597 = vmatprep.subr.mxu0 0.0
    %598 = vmatpush1.msra.mxu0 0.0
    %599 = vmatprep.subr.mxu0 0.0
    %600 = vmatpush1.msra.mxu0 0.0
    %601 = vmatprep.subr.mxu0 0.0
    %602 = vmatpush1.msra.mxu0 0.0
    %603 = vmatprep.subr.mxu0 0.0
    %604 = vmatpush1.msra.mxu0 0.0
    %605 = vmatprep.subr.mxu0 0.0
    %606 = vmatpush1.msra.mxu0 0.0
    %607 = vmatprep.subr.mxu0 0.0
    %608 = vmatpush1.msra.mxu0 0.0
    %609 = vmatprep.subr.mxu0 0.0
    %610 = vmatpush1.msra.mxu0 0.0
    %611 = vmatprep.subr.mxu0 0.0
    %612 = vmatpush1.msra.mxu0 0.0
    %613 = vmatprep.subr.mxu0 0.0
    %614 = vmatpush1.msra.mxu0 0.0
    %615 = vmatprep.subr.mxu0 0.0
    %616 = vmatpush1.msra.mxu0 0.0
    %617 = vmatprep.subr.mxu0 0.0
    %618 = vmatpush1.msra.mxu0 0.0
    %619 = vmatprep.subr.mxu0 0.0
    %620 = vmatpush1.msra.mxu0 0.0
    %621 = vmatprep.subr.mxu0 0.0
    %622 = vmatpush1.msra.mxu0 0.0
    %623 = vmatprep.subr.mxu0 0.0
    %624 = vmatpush1.msra.mxu0 0.0
    %625 = vmatprep.subr.mxu0 0.0
    %626 = vmatpush1.msra.mxu0 %v593
    %627 = vmatprep.subr.mxu0 0.0
    %628 = vmatpush2.msra.mxu0 0.0
    %629 = vmatprep.subr.mxu0 0.0
    %630 = vmatpush2.msra.mxu0 0.0
    %631 = vmatprep.subr.mxu0 0.0
    %632 = vmatpush2.msra.mxu0 0.0
    %633 = vmatprep.subr.mxu0 0.0
    %634 = vmatpush2.msra.mxu0 0.0
    %635 = vmatprep.subr.mxu0 0.0
    %636 = vmatpush2.msra.mxu0 0.0
    %637 = vmatprep.subr.mxu0 0.0
    %638 = vmatpush2.msra.mxu0 0.0
    %639 = vmatprep.subr.mxu0 0.0
    %640 = vmatpush2.msra.mxu0 0.0
    %641 = vmatprep.subr.mxu0 0.0
    %642 = vmatpush2.msra.mxu0 0.0
    %643 = vmatprep.subr.mxu0 0.0
    %644 = vmatpush2.msra.mxu0 0.0
    %645 = vmatprep.subr.mxu0 0.0
    %646 = vmatpush2.msra.mxu0 0.0
    %647 = vmatprep.subr.mxu0 0.0
    %648 = vmatpush2.msra.mxu0 0.0
    %649 = vmatprep.subr.mxu0 0.0
    %650 = vmatpush2.msra.mxu0 0.0
    %651 = vmatprep.subr.mxu0 0.0
    %652 = vmatpush2.msra.mxu0 0.0
    %653 = vmatprep.subr.mxu0 0.0
    %654 = vmatpush2.msra.mxu0 0.0
    %655 = vmatprep.subr.mxu0 0.0
    %656 = vmatpush2.msra.mxu0 0.0
    %657 = vmatprep.subr.mxu0 0.0
    %658 = vmatpush2.msra.mxu0 0.0
    %659 = vmatprep.mubr.f32.mxu0 0.0
    %660 = vmatmul.mubr.f32.gmra.mxu0 %v575
    %v661 = vpop.f32.mrf.mxu0
    %v662 = vadd.f32 0.0, %v661
    %v663 = vpop.f32.mrf.mxu0
    %664 = vmatprep.mubr.f32.mxu0 0.0
    %665 = vmatmul.mubr.f32.gmra.mxu0 %v578
    %v666 = vpop.f32.mrf.mxu0
    %v667 = vadd.f32 0.0, %v666
    %v668 = vpop.f32.mrf.mxu0
    %669 = vmatprep.mubr.f32.mxu0 0.0
    %670 = vmatmul.mubr.f32.gmra.mxu0 %v581
    %v671 = vpop.f32.mrf.mxu0
    %v672 = vadd.f32 0.0, %v671
    %v673 = vpop.f32.mrf.mxu0
    %674 = vmatprep.mubr.f32.mxu0 0.0
    %675 = vmatmul.mubr.f32.gmra.mxu0 %v584
    %v676 = vpop.f32.mrf.mxu0
    %v677 = vadd.f32 0.0, %v676
    %v678 = vpop.f32.mrf.mxu0
    %679 = vmatprep.mubr.f32.mxu0 0.0
    %680 = vmatmul.mubr.f32.gmra.mxu0 %v587
    %v681 = vpop.f32.mrf.mxu0
    %v682 = vadd.f32 0.0, %v681
    %v683 = vpop.f32.mrf.mxu0
    %684 = vmatprep.mubr.f32.mxu0 0.0
    %685 = vmatmul.mubr.f32.gmra.mxu0 %v590
    %v686 = vpop.f32.mrf.mxu0
    %v687 = vadd.f32 0.0, %v686
    %v688 = vpop.f32.mrf.mxu0
    %689 = vdwg.mxu0
    %v690 = vadd.f32 %v560, %v662
    %v691 = vadd.f32 %v561, %v667
    %v692 = vadd.f32 %v562, %v672
    %v693 = vadd.f32 %v563, %v677
    %v694 = vadd.f32 %v564, %v682
    %v695 = vadd.f32 %v565, %v687
    %v696 = vld [vmem:[%s2] sm:$0x1]
    %v698 = vlaneseq
    %v699 = vshrl.u32 %v698, 7
    %v700 = vsub.s32 0, %v699
    %v701 = vrot.slane %v696, %v700
    %v703 = vadd.f32 %v690, %v701
    %v704 = vadd.f32 %v691, %v701
    %v705 = vadd.f32 %v692, %v701
    %v706 = vadd.f32 %v693, %v701
    %v707 = vadd.f32 %v694, %v701
    %v708 = vadd.f32 %v695, %v701
    %v709 = vmax.f32 %v703, 0.0
    %v710 = vmax.f32 %v704, 0.0
    %v711 = vmax.f32 %v705, 0.0
    %v712 = vmax.f32 %v706, 0.0
    %v713 = vmax.f32 %v707, 0.0
    %v714 = vmax.f32 %v708, 0.0
    %vm715 = vcmask 261120
    %716 = vst.msk [vmem:[#allocation3] sm:$0xff] %vm715, 0.0
    %717 = vst.msk [vmem:[#allocation3 + $0x8] sm:$0xff] %vm715, %v709
    %718 = vst.msk [vmem:[#allocation3 + $0x10] sm:$0xff] %vm715, %v710
    %719 = vst.msk [vmem:[#allocation3 + $0x18] sm:$0xff] %vm715, %v711
    %720 = vst.msk [vmem:[#allocation3 + $0x20] sm:$0xff] %vm715, %v712
    %721 = vst.msk [vmem:[#allocation3 + $0x28] sm:$0xff] %vm715, %v713
    %722 = vst.msk [vmem:[#allocation3 + $0x30] sm:$0xff] %vm715, %v714
    %723 = vst.msk [vmem:[#allocation3 + $0x38] sm:$0xff] %vm715, 0.0
    %vm724 = vcmask 254976
    %725 = vst.msk [vmem:[#allocation3 + $0x8] sm:$0x3] %vm724, 0.0
    %726 = vst.msk [vmem:[#allocation3 + $0x1a] sm:$0x3] %vm724, 0.0
    %727 = vst.msk [vmem:[#allocation3 + $0x20] sm:$0x3] %vm724, 0.0
    %728 = vst.msk [vmem:[#allocation3 + $0x32] sm:$0x3] %vm724, 0.0
    %v729 = vld [vmem:[#allocation3 + $0x6] sm:$0xff]
    %v730 = vld [vmem:[#allocation3 + $0xe] sm:$0xff]
    %v731 = vld [vmem:[#allocation3 + $0x16] sm:$0xff]
    %v732 = vld [vmem:[#allocation3 + $0x1e] sm:$0xff]
    %v733 = vld [vmem:[#allocation3 + $0x26] sm:$0xff]
    %v734 = vld [vmem:[#allocation3 + $0x2e] sm:$0xff]
    %v735 = vld [vmem:[#allocation5] sm:$0xff]
    %v736 = vld [vmem:[#allocation5 + $0x8] sm:$0xff]
    %v737 = vld [vmem:[#allocation5 + $0x10] sm:$0xff]
    %v738 = vld [vmem:[#allocation5 + $0x18] sm:$0xff]
    %v739 = vld [vmem:[#allocation3 + $0x7] sm:$0xff]
    %v740 = vld [vmem:[#allocation3 + $0xf] sm:$0xff]
    %v741 = vld [vmem:[#allocation3 + $0x17] sm:$0xff]
    %v742 = vld [vmem:[#allocation3 + $0x1f] sm:$0xff]
    %v743 = vld [vmem:[#allocation3 + $0x27] sm:$0xff]
    %v744 = vld [vmem:[#allocation3 + $0x2f] sm:$0xff]
    %s745 = scalar_lea.vmem [#allocation5], 32
    %v746 = vld [vmem:[%s745] sm:$0xff]
    %v747 = vld [vmem:[%s745 + $0x8] sm:$0xff]
    %v748 = vld [vmem:[%s745 + $0x10] sm:$0xff]
    %v749 = vld [vmem:[%s745 + $0x18] sm:$0xff]
    %v751 = vsel %vm715, %v739, 0
    %v754 = vsel %vm715, %v740, 0
    %v757 = vsel %vm715, %v741, 0
    %v760 = vsel %vm715, %v742, 0
    %v763 = vsel %vm715, %v743, 0
    %v766 = vsel %vm715, %v744, 0
    %768 = vmatprep.subr.mxu0 0.0
    %769 = vmatpush1.msra.mxu0 0.0
    %770 = vmatprep.subr.mxu0 0.0
    %771 = vmatpush1.msra.mxu0 0.0
    %772 = vmatprep.subr.mxu0 0.0
    %773 = vmatpush1.msra.mxu0 0.0
    %774 = vmatprep.subr.mxu0 0.0
    %775 = vmatpush1.msra.mxu0 0.0
    %776 = vmatprep.subr.mxu0 0.0
    %777 = vmatpush1.msra.mxu0 0.0
    %778 = vmatprep.subr.mxu0 0.0
    %779 = vmatpush1.msra.mxu0 0.0
    %780 = vmatprep.subr.mxu0 0.0
    %781 = vmatpush1.msra.mxu0 0.0
    %782 = vmatprep.subr.mxu0 0.0
    %783 = vmatpush1.msra.mxu0 0.0
    %784 = vmatprep.subr.mxu0 0.0
    %785 = vmatpush1.msra.mxu0 0.0
    %786 = vmatprep.subr.mxu0 0.0
    %787 = vmatpush1.msra.mxu0 0.0
    %788 = vmatprep.subr.mxu0 0.0
    %789 = vmatpush1.msra.mxu0 0.0
    %790 = vmatprep.subr.mxu0 0.0
    %791 = vmatpush1.msra.mxu0 0.0
    %792 = vmatprep.subr.mxu0 0.0
    %793 = vmatpush1.msra.mxu0 %v749
    %794 = vmatprep.subr.mxu0 0.0
    %795 = vmatpush1.msra.mxu0 %v748
    %796 = vmatprep.subr.mxu0 0.0
    %797 = vmatpush1.msra.mxu0 %v747
    %798 = vmatprep.subr.mxu0 0.0
    %799 = vmatpush1.msra.mxu0 %v746
    %800 = vmatprep.subr.mxu0 0.0
    %801 = vmatpush2.msra.mxu0 0.0
    %802 = vmatprep.subr.mxu0 0.0
    %803 = vmatpush2.msra.mxu0 0.0
    %804 = vmatprep.subr.mxu0 0.0
    %805 = vmatpush2.msra.mxu0 0.0
    %806 = vmatprep.subr.mxu0 0.0
    %807 = vmatpush2.msra.mxu0 0.0
    %808 = vmatprep.subr.mxu0 0.0
    %809 = vmatpush2.msra.mxu0 0.0
    %810 = vmatprep.subr.mxu0 0.0
    %811 = vmatpush2.msra.mxu0 0.0
    %812 = vmatprep.subr.mxu0 0.0
    %813 = vmatpush2.msra.mxu0 0.0
    %814 = vmatprep.subr.mxu0 0.0
    %815 = vmatpush2.msra.mxu0 0.0
    %816 = vmatprep.subr.mxu0 0.0
    %817 = vmatpush2.msra.mxu0 0.0
    %818 = vmatprep.subr.mxu0 0.0
    %819 = vmatpush2.msra.mxu0 0.0
    %820 = vmatprep.subr.mxu0 0.0
    %821 = vmatpush2.msra.mxu0 0.0
    %822 = vmatprep.subr.mxu0 0.0
    %823 = vmatpush2.msra.mxu0 0.0
    %824 = vmatprep.subr.mxu0 0.0
    %825 = vmatpush2.msra.mxu0 0.0
    %826 = vmatprep.subr.mxu0 0.0
    %827 = vmatpush2.msra.mxu0 0.0
    %828 = vmatprep.subr.mxu0 0.0
    %829 = vmatpush2.msra.mxu0 0.0
    %830 = vmatprep.subr.mxu0 0.0
    %831 = vmatpush2.msra.mxu0 0.0
    %832 = vmatprep.mubr.f32.mxu0 0.0
    %833 = vmatmul.mubr.f32.gmra.mxu0 %v751
    %v834 = vpop.f32.mrf.mxu0
    %v835 = vadd.f32 0.0, %v834
    %v836 = vpop.f32.mrf.mxu0
    %837 = vmatprep.mubr.f32.mxu0 0.0
    %838 = vmatmul.mubr.f32.gmra.mxu0 %v754
    %v839 = vpop.f32.mrf.mxu0
    %v840 = vadd.f32 0.0, %v839
    %v841 = vpop.f32.mrf.mxu0
    %842 = vmatprep.mubr.f32.mxu0 0.0
    %843 = vmatmul.mubr.f32.gmra.mxu0 %v757
    %v844 = vpop.f32.mrf.mxu0
    %v845 = vadd.f32 0.0, %v844
    %v846 = vpop.f32.mrf.mxu0
    %847 = vmatprep.mubr.f32.mxu0 0.0
    %848 = vmatmul.mubr.f32.gmra.mxu0 %v760
    %v849 = vpop.f32.mrf.mxu0
    %v850 = vadd.f32 0.0, %v849
    %v851 = vpop.f32.mrf.mxu0
    %852 = vmatprep.mubr.f32.mxu0 0.0
    %853 = vmatmul.mubr.f32.gmra.mxu0 %v763
    %v854 = vpop.f32.mrf.mxu0
    %v855 = vadd.f32 0.0, %v854
    %v856 = vpop.f32.mrf.mxu0
    %857 = vmatprep.mubr.f32.mxu0 0.0
    %858 = vmatmul.mubr.f32.gmra.mxu0 %v766
    %v859 = vpop.f32.mrf.mxu0
    %v860 = vadd.f32 0.0, %v859
    %v861 = vpop.f32.mrf.mxu0
    %862 = vdwg.mxu0
    %v864 = vsel %vm715, %v729, 0
    %v867 = vsel %vm715, %v730, 0
    %v870 = vsel %vm715, %v731, 0
    %v873 = vsel %vm715, %v732, 0
    %v876 = vsel %vm715, %v733, 0
    %v879 = vsel %vm715, %v734, 0
    %881 = vmatprep.subr.mxu0 0.0
    %882 = vmatpush1.msra.mxu0 0.0
    %883 = vmatprep.subr.mxu0 0.0
    %884 = vmatpush1.msra.mxu0 0.0
    %885 = vmatprep.subr.mxu0 0.0
    %886 = vmatpush1.msra.mxu0 0.0
    %887 = vmatprep.subr.mxu0 0.0
    %888 = vmatpush1.msra.mxu0 0.0
    %889 = vmatprep.subr.mxu0 0.0
    %890 = vmatpush1.msra.mxu0 0.0
    %891 = vmatprep.subr.mxu0 0.0
    %892 = vmatpush1.msra.mxu0 0.0
    %893 = vmatprep.subr.mxu0 0.0
    %894 = vmatpush1.msra.mxu0 0.0
    %895 = vmatprep.subr.mxu0 0.0
    %896 = vmatpush1.msra.mxu0 0.0
    %897 = vmatprep.subr.mxu0 0.0
    %898 = vmatpush1.msra.mxu0 0.0
    %899 = vmatprep.subr.mxu0 0.0
    %900 = vmatpush1.msra.mxu0 0.0
    %901 = vmatprep.subr.mxu0 0.0
    %902 = vmatpush1.msra.mxu0 0.0
    %903 = vmatprep.subr.mxu0 0.0
    %904 = vmatpush1.msra.mxu0 0.0
    %905 = vmatprep.subr.mxu0 0.0
    %906 = vmatpush1.msra.mxu0 %v738
    %907 = vmatprep.subr.mxu0 0.0
    %908 = vmatpush1.msra.mxu0 %v737
    %909 = vmatprep.subr.mxu0 0.0
    %910 = vmatpush1.msra.mxu0 %v736
    %911 = vmatprep.subr.mxu0 0.0
    %912 = vmatpush1.msra.mxu0 %v735
    %913 = vmatprep.subr.mxu0 0.0
    %914 = vmatpush2.msra.mxu0 0.0
    %915 = vmatprep.subr.mxu0 0.0
    %916 = vmatpush2.msra.mxu0 0.0
    %917 = vmatprep.subr.mxu0 0.0
    %918 = vmatpush2.msra.mxu0 0.0
    %919 = vmatprep.subr.mxu0 0.0
    %920 = vmatpush2.msra.mxu0 0.0
    %921 = vmatprep.subr.mxu0 0.0
    %922 = vmatpush2.msra.mxu0 0.0
    %923 = vmatprep.subr.mxu0 0.0
    %924 = vmatpush2.msra.mxu0 0.0
    %925 = vmatprep.subr.mxu0 0.0
    %926 = vmatpush2.msra.mxu0 0.0
    %927 = vmatprep.subr.mxu0 0.0
    %928 = vmatpush2.msra.mxu0 0.0
    %929 = vmatprep.subr.mxu0 0.0
    %930 = vmatpush2.msra.mxu0 0.0
    %931 = vmatprep.subr.mxu0 0.0
    %932 = vmatpush2.msra.mxu0 0.0
    %933 = vmatprep.subr.mxu0 0.0
    %934 = vmatpush2.msra.mxu0 0.0
    %935 = vmatprep.subr.mxu0 0.0
    %936 = vmatpush2.msra.mxu0 0.0
    %937 = vmatprep.subr.mxu0 0.0
    %938 = vmatpush2.msra.mxu0 0.0
    %939 = vmatprep.subr.mxu0 0.0
    %940 = vmatpush2.msra.mxu0 0.0
    %941 = vmatprep.subr.mxu0 0.0
    %942 = vmatpush2.msra.mxu0 0.0
    %943 = vmatprep.subr.mxu0 0.0
    %944 = vmatpush2.msra.mxu0 0.0
    %945 = vmatprep.mubr.f32.mxu0 0.0
    %946 = vmatmul.mubr.f32.gmra.mxu0 %v864
    %v947 = vpop.f32.mrf.mxu0
    %v948 = vadd.f32 %v835, %v947
    %v949 = vpop.f32.mrf.mxu0
    %950 = vmatprep.mubr.f32.mxu0 0.0
    %951 = vmatmul.mubr.f32.gmra.mxu0 %v867
    %v952 = vpop.f32.mrf.mxu0
    %v953 = vadd.f32 %v840, %v952
    %v954 = vpop.f32.mrf.mxu0
    %955 = vmatprep.mubr.f32.mxu0 0.0
    %956 = vmatmul.mubr.f32.gmra.mxu0 %v870
    %v957 = vpop.f32.mrf.mxu0
    %v958 = vadd.f32 %v845, %v957
    %v959 = vpop.f32.mrf.mxu0
    %960 = vmatprep.mubr.f32.mxu0 0.0
    %961 = vmatmul.mubr.f32.gmra.mxu0 %v873
    %v962 = vpop.f32.mrf.mxu0
    %v963 = vadd.f32 %v850, %v962
    %v964 = vpop.f32.mrf.mxu0
    %965 = vmatprep.mubr.f32.mxu0 0.0
    %966 = vmatmul.mubr.f32.gmra.mxu0 %v876
    %v967 = vpop.f32.mrf.mxu0
    %v968 = vadd.f32 %v855, %v967
    %v969 = vpop.f32.mrf.mxu0
    %970 = vmatprep.mubr.f32.mxu0 0.0
    %971 = vmatmul.mubr.f32.gmra.mxu0 %v879
    %v972 = vpop.f32.mrf.mxu0
    %v973 = vadd.f32 %v860, %v972
    %v974 = vpop.f32.mrf.mxu0
    %975 = vdwg.mxu0
    %v976 = vld [vmem:[#allocation3 + $0x8] sm:$0xff]
    %v977 = vld [vmem:[#allocation3 + $0x10] sm:$0xff]
    %v978 = vld [vmem:[#allocation3 + $0x18] sm:$0xff]
    %v979 = vld [vmem:[#allocation3 + $0x20] sm:$0xff]
    %v980 = vld [vmem:[#allocation3 + $0x28] sm:$0xff]
    %v981 = vld [vmem:[#allocation3 + $0x30] sm:$0xff]
    %s982 = scalar_lea.vmem [#allocation5], 64
    %v983 = vld [vmem:[%s982] sm:$0xff]
    %v984 = vld [vmem:[%s982 + $0x8] sm:$0xff]
    %v985 = vld [vmem:[%s982 + $0x10] sm:$0xff]
    %v986 = vld [vmem:[%s982 + $0x18] sm:$0xff]
    %v988 = vsel %vm715, %v976, 0
    %v991 = vsel %vm715, %v977, 0
    %v994 = vsel %vm715, %v978, 0
    %v997 = vsel %vm715, %v979, 0
    %v1000 = vsel %vm715, %v980, 0
    %v1003 = vsel %vm715, %v981, 0
    %1005 = vmatprep.subr.mxu0 0.0
    %1006 = vmatpush1.msra.mxu0 0.0
    %1007 = vmatprep.subr.mxu0 0.0
    %1008 = vmatpush1.msra.mxu0 0.0
    %1009 = vmatprep.subr.mxu0 0.0
    %1010 = vmatpush1.msra.mxu0 0.0
    %1011 = vmatprep.subr.mxu0 0.0
    %1012 = vmatpush1.msra.mxu0 0.0
    %1013 = vmatprep.subr.mxu0 0.0
    %1014 = vmatpush1.msra.mxu0 0.0
    %1015 = vmatprep.subr.mxu0 0.0
    %1016 = vmatpush1.msra.mxu0 0.0
    %1017 = vmatprep.subr.mxu0 0.0
    %1018 = vmatpush1.msra.mxu0 0.0
    %1019 = vmatprep.subr.mxu0 0.0
    %1020 = vmatpush1.msra.mxu0 0.0
    %1021 = vmatprep.subr.mxu0 0.0
    %1022 = vmatpush1.msra.mxu0 0.0
    %1023 = vmatprep.subr.mxu0 0.0
    %1024 = vmatpush1.msra.mxu0 0.0
    %1025 = vmatprep.subr.mxu0 0.0
    %1026 = vmatpush1.msra.mxu0 0.0
    %1027 = vmatprep.subr.mxu0 0.0
    %1028 = vmatpush1.msra.mxu0 0.0
    %1029 = vmatprep.subr.mxu0 0.0
    %1030 = vmatpush1.msra.mxu0 %v986
    %1031 = vmatprep.subr.mxu0 0.0
    %1032 = vmatpush1.msra.mxu0 %v985
    %1033 = vmatprep.subr.mxu0 0.0
    %1034 = vmatpush1.msra.mxu0 %v984
    %1035 = vmatprep.subr.mxu0 0.0
    %1036 = vmatpush1.msra.mxu0 %v983
    %1037 = vmatprep.subr.mxu0 0.0
    %1038 = vmatpush2.msra.mxu0 0.0
    %1039 = vmatprep.subr.mxu0 0.0
    %1040 = vmatpush2.msra.mxu0 0.0
    %1041 = vmatprep.subr.mxu0 0.0
    %1042 = vmatpush2.msra.mxu0 0.0
    %1043 = vmatprep.subr.mxu0 0.0
    %1044 = vmatpush2.msra.mxu0 0.0
    %1045 = vmatprep.subr.mxu0 0.0
    %1046 = vmatpush2.msra.mxu0 0.0
    %1047 = vmatprep.subr.mxu0 0.0
    %1048 = vmatpush2.msra.mxu0 0.0
    %1049 = vmatprep.subr.mxu0 0.0
    %1050 = vmatpush2.msra.mxu0 0.0
    %1051 = vmatprep.subr.mxu0 0.0
    %1052 = vmatpush2.msra.mxu0 0.0
    %1053 = vmatprep.subr.mxu0 0.0
    %1054 = vmatpush2.msra.mxu0 0.0
    %1055 = vmatprep.subr.mxu0 0.0
    %1056 = vmatpush2.msra.mxu0 0.0
    %1057 = vmatprep.subr.mxu0 0.0
    %1058 = vmatpush2.msra.mxu0 0.0
    %1059 = vmatprep.subr.mxu0 0.0
    %1060 = vmatpush2.msra.mxu0 0.0
    %1061 = vmatprep.subr.mxu0 0.0
    %1062 = vmatpush2.msra.mxu0 0.0
    %1063 = vmatprep.subr.mxu0 0.0
    %1064 = vmatpush2.msra.mxu0 0.0
    %1065 = vmatprep.subr.mxu0 0.0
    %1066 = vmatpush2.msra.mxu0 0.0
    %1067 = vmatprep.subr.mxu0 0.0
    %1068 = vmatpush2.msra.mxu0 0.0
    %1069 = vmatprep.mubr.f32.mxu0 0.0
    %1070 = vmatmul.mubr.f32.gmra.mxu0 %v988
    %v1071 = vpop.f32.mrf.mxu0
    %v1072 = vadd.f32 0.0, %v1071
    %v1073 = vpop.f32.mrf.mxu0
    %1074 = vmatprep.mubr.f32.mxu0 0.0
    %1075 = vmatmul.mubr.f32.gmra.mxu0 %v991
    %v1076 = vpop.f32.mrf.mxu0
    %v1077 = vadd.f32 0.0, %v1076
    %v1078 = vpop.f32.mrf.mxu0
    %1079 = vmatprep.mubr.f32.mxu0 0.0
    %1080 = vmatmul.mubr.f32.gmra.mxu0 %v994
    %v1081 = vpop.f32.mrf.mxu0
    %v1082 = vadd.f32 0.0, %v1081
    %v1083 = vpop.f32.mrf.mxu0
    %1084 = vmatprep.mubr.f32.mxu0 0.0
    %1085 = vmatmul.mubr.f32.gmra.mxu0 %v997
    %v1086 = vpop.f32.mrf.mxu0
    %v1087 = vadd.f32 0.0, %v1086
    %v1088 = vpop.f32.mrf.mxu0
    %1089 = vmatprep.mubr.f32.mxu0 0.0
    %1090 = vmatmul.mubr.f32.gmra.mxu0 %v1000
    %v1091 = vpop.f32.mrf.mxu0
    %v1092 = vadd.f32 0.0, %v1091
    %v1093 = vpop.f32.mrf.mxu0
    %1094 = vmatprep.mubr.f32.mxu0 0.0
    %1095 = vmatmul.mubr.f32.gmra.mxu0 %v1003
    %v1096 = vpop.f32.mrf.mxu0
    %v1097 = vadd.f32 0.0, %v1096
    %v1098 = vpop.f32.mrf.mxu0
    %1099 = vdwg.mxu0
    %v1100 = vadd.f32 %v948, %v1072
    %v1101 = vadd.f32 %v953, %v1077
    %v1102 = vadd.f32 %v958, %v1082
    %v1103 = vadd.f32 %v963, %v1087
    %v1104 = vadd.f32 %v968, %v1092
    %v1105 = vadd.f32 %v973, %v1097
    %v1106 = vld [vmem:[#allocation3 + $0x9] sm:$0xff]
    %v1107 = vld [vmem:[#allocation3 + $0x11] sm:$0xff]
    %v1108 = vld [vmem:[#allocation3 + $0x19] sm:$0xff]
    %v1109 = vld [vmem:[#allocation3 + $0x21] sm:$0xff]
    %v1110 = vld [vmem:[#allocation3 + $0x29] sm:$0xff]
    %v1111 = vld [vmem:[#allocation3 + $0x31] sm:$0xff]
    %s1112 = scalar_lea.vmem [#allocation5], 96
    %v1113 = vld [vmem:[%s1112] sm:$0xff]
    %v1114 = vld [vmem:[%s1112 + $0x8] sm:$0xff]
    %v1115 = vld [vmem:[%s1112 + $0x10] sm:$0xff]
    %v1116 = vld [vmem:[%s1112 + $0x18] sm:$0xff]
    %v1118 = vsel %vm715, %v1106, 0
    %v1121 = vsel %vm715, %v1107, 0
    %v1124 = vsel %vm715, %v1108, 0
    %v1127 = vsel %vm715, %v1109, 0
    %v1130 = vsel %vm715, %v1110, 0
    %v1133 = vsel %vm715, %v1111, 0
    %1135 = vmatprep.subr.mxu0 0.0
    %1136 = vmatpush1.msra.mxu0 0.0
    %1137 = vmatprep.subr.mxu0 0.0
    %1138 = vmatpush1.msra.mxu0 0.0
    %1139 = vmatprep.subr.mxu0 0.0
    %1140 = vmatpush1.msra.mxu0 0.0
    %1141 = vmatprep.subr.mxu0 0.0
    %1142 = vmatpush1.msra.mxu0 0.0
    %1143 = vmatprep.subr.mxu0 0.0
    %1144 = vmatpush1.msra.mxu0 0.0
    %1145 = vmatprep.subr.mxu0 0.0
    %1146 = vmatpush1.msra.mxu0 0.0
    %1147 = vmatprep.subr.mxu0 0.0
    %1148 = vmatpush1.msra.mxu0 0.0
    %1149 = vmatprep.subr.mxu0 0.0
    %1150 = vmatpush1.msra.mxu0 0.0
    %1151 = vmatprep.subr.mxu0 0.0
    %1152 = vmatpush1.msra.mxu0 0.0
    %1153 = vmatprep.subr.mxu0 0.0
    %1154 = vmatpush1.msra.mxu0 0.0
    %1155 = vmatprep.subr.mxu0 0.0
    %1156 = vmatpush1.msra.mxu0 0.0
    %1157 = vmatprep.subr.mxu0 0.0
    %1158 = vmatpush1.msra.mxu0 0.0
    %1159 = vmatprep.subr.mxu0 0.0
    %1160 = vmatpush1.msra.mxu0 %v1116
    %1161 = vmatprep.subr.mxu0 0.0
    %1162 = vmatpush1.msra.mxu0 %v1115
    %1163 = vmatprep.subr.mxu0 0.0
    %1164 = vmatpush1.msra.mxu0 %v1114
    %1165 = vmatprep.subr.mxu0 0.0
    %1166 = vmatpush1.msra.mxu0 %v1113
    %1167 = vmatprep.subr.mxu0 0.0
    %1168 = vmatpush2.msra.mxu0 0.0
    %1169 = vmatprep.subr.mxu0 0.0
    %1170 = vmatpush2.msra.mxu0 0.0
    %1171 = vmatprep.subr.mxu0 0.0
    %1172 = vmatpush2.msra.mxu0 0.0
    %1173 = vmatprep.subr.mxu0 0.0
    %1174 = vmatpush2.msra.mxu0 0.0
    %1175 = vmatprep.subr.mxu0 0.0
    %1176 = vmatpush2.msra.mxu0 0.0
    %1177 = vmatprep.subr.mxu0 0.0
    %1178 = vmatpush2.msra.mxu0 0.0
    %1179 = vmatprep.subr.mxu0 0.0
    %1180 = vmatpush2.msra.mxu0 0.0
    %1181 = vmatprep.subr.mxu0 0.0
    %1182 = vmatpush2.msra.mxu0 0.0
    %1183 = vmatprep.subr.mxu0 0.0
    %1184 = vmatpush2.msra.mxu0 0.0
    %1185 = vmatprep.subr.mxu0 0.0
    %1186 = vmatpush2.msra.mxu0 0.0
    %1187 = vmatprep.subr.mxu0 0.0
    %1188 = vmatpush2.msra.mxu0 0.0
    %1189 = vmatprep.subr.mxu0 0.0
    %1190 = vmatpush2.msra.mxu0 0.0
    %1191 = vmatprep.subr.mxu0 0.0
    %1192 = vmatpush2.msra.mxu0 0.0
    %1193 = vmatprep.subr.mxu0 0.0
    %1194 = vmatpush2.msra.mxu0 0.0
    %1195 = vmatprep.subr.mxu0 0.0
    %1196 = vmatpush2.msra.mxu0 0.0
    %1197 = vmatprep.subr.mxu0 0.0
    %1198 = vmatpush2.msra.mxu0 0.0
    %1199 = vmatprep.mubr.f32.mxu0 0.0
    %1200 = vmatmul.mubr.f32.gmra.mxu0 %v1118
    %v1201 = vpop.f32.mrf.mxu0
    %v1202 = vadd.f32 0.0, %v1201
    %v1203 = vpop.f32.mrf.mxu0
    %1204 = vmatprep.mubr.f32.mxu0 0.0
    %1205 = vmatmul.mubr.f32.gmra.mxu0 %v1121
    %v1206 = vpop.f32.mrf.mxu0
    %v1207 = vadd.f32 0.0, %v1206
    %v1208 = vpop.f32.mrf.mxu0
    %1209 = vmatprep.mubr.f32.mxu0 0.0
    %1210 = vmatmul.mubr.f32.gmra.mxu0 %v1124
    %v1211 = vpop.f32.mrf.mxu0
    %v1212 = vadd.f32 0.0, %v1211
    %v1213 = vpop.f32.mrf.mxu0
    %1214 = vmatprep.mubr.f32.mxu0 0.0
    %1215 = vmatmul.mubr.f32.gmra.mxu0 %v1127
    %v1216 = vpop.f32.mrf.mxu0
    %v1217 = vadd.f32 0.0, %v1216
    %v1218 = vpop.f32.mrf.mxu0
    %1219 = vmatprep.mubr.f32.mxu0 0.0
    %1220 = vmatmul.mubr.f32.gmra.mxu0 %v1130
    %v1221 = vpop.f32.mrf.mxu0
    %v1222 = vadd.f32 0.0, %v1221
    %v1223 = vpop.f32.mrf.mxu0
    %1224 = vmatprep.mubr.f32.mxu0 0.0
    %1225 = vmatmul.mubr.f32.gmra.mxu0 %v1133
    %v1226 = vpop.f32.mrf.mxu0
    %v1227 = vadd.f32 0.0, %v1226
    %v1228 = vpop.f32.mrf.mxu0
    %1229 = vdwg.mxu0
    %v1230 = vadd.f32 %v1100, %v1202
    %v1231 = vadd.f32 %v1101, %v1207
    %v1232 = vadd.f32 %v1102, %v1212
    %v1233 = vadd.f32 %v1103, %v1217
    %v1234 = vadd.f32 %v1104, %v1222
    %v1235 = vadd.f32 %v1105, %v1227
    %v1236 = vld [vmem:[#allocation3 + $0xa] sm:$0xff]
    %v1237 = vld [vmem:[#allocation3 + $0x12] sm:$0xff]
    %v1238 = vld [vmem:[#allocation3 + $0x1a] sm:$0xff]
    %v1239 = vld [vmem:[#allocation3 + $0x22] sm:$0xff]
    %v1240 = vld [vmem:[#allocation3 + $0x2a] sm:$0xff]
    %v1241 = vld [vmem:[#allocation3 + $0x32] sm:$0xff]
    %s1242 = scalar_lea.vmem [#allocation5], 128
    %v1243 = vld [vmem:[%s1242] sm:$0xff]
    %v1244 = vld [vmem:[%s1242 + $0x8] sm:$0xff]
    %v1245 = vld [vmem:[%s1242 + $0x10] sm:$0xff]
    %v1246 = vld [vmem:[%s1242 + $0x18] sm:$0xff]
    %v1248 = vsel %vm715, %v1236, 0
    %v1251 = vsel %vm715, %v1237, 0
    %v1254 = vsel %vm715, %v1238, 0
    %v1257 = vsel %vm715, %v1239, 0
    %v1260 = vsel %vm715, %v1240, 0
    %v1263 = vsel %vm715, %v1241, 0
    %1265 = vmatprep.subr.mxu0 0.0
    %1266 = vmatpush1.msra.mxu0 0.0
    %1267 = vmatprep.subr.mxu0 0.0
    %1268 = vmatpush1.msra.mxu0 0.0
    %1269 = vmatprep.subr.mxu0 0.0
    %1270 = vmatpush1.msra.mxu0 0.0
    %1271 = vmatprep.subr.mxu0 0.0
    %1272 = vmatpush1.msra.mxu0 0.0
    %1273 = vmatprep.subr.mxu0 0.0
    %1274 = vmatpush1.msra.mxu0 0.0
    %1275 = vmatprep.subr.mxu0 0.0
    %1276 = vmatpush1.msra.mxu0 0.0
    %1277 = vmatprep.subr.mxu0 0.0
    %1278 = vmatpush1.msra.mxu0 0.0
    %1279 = vmatprep.subr.mxu0 0.0
    %1280 = vmatpush1.msra.mxu0 0.0
    %1281 = vmatprep.subr.mxu0 0.0
    %1282 = vmatpush1.msra.mxu0 0.0
    %1283 = vmatprep.subr.mxu0 0.0
    %1284 = vmatpush1.msra.mxu0 0.0
    %1285 = vmatprep.subr.mxu0 0.0
    %1286 = vmatpush1.msra.mxu0 0.0
    %1287 = vmatprep.subr.mxu0 0.0
    %1288 = vmatpush1.msra.mxu0 0.0
    %1289 = vmatprep.subr.mxu0 0.0
    %1290 = vmatpush1.msra.mxu0 %v1246
    %1291 = vmatprep.subr.mxu0 0.0
    %1292 = vmatpush1.msra.mxu0 %v1245
    %1293 = vmatprep.subr.mxu0 0.0
    %1294 = vmatpush1.msra.mxu0 %v1244
    %1295 = vmatprep.subr.mxu0 0.0
    %1296 = vmatpush1.msra.mxu0 %v1243
    %1297 = vmatprep.subr.mxu0 0.0
    %1298 = vmatpush2.msra.mxu0 0.0
    %1299 = vmatprep.subr.mxu0 0.0
    %1300 = vmatpush2.msra.mxu0 0.0
    %1301 = vmatprep.subr.mxu0 0.0
    %1302 = vmatpush2.msra.mxu0 0.0
    %1303 = vmatprep.subr.mxu0 0.0
    %1304 = vmatpush2.msra.mxu0 0.0
    %1305 = vmatprep.subr.mxu0 0.0
    %1306 = vmatpush2.msra.mxu0 0.0
    %1307 = vmatprep.subr.mxu0 0.0
    %1308 = vmatpush2.msra.mxu0 0.0
    %1309 = vmatprep.subr.mxu0 0.0
    %1310 = vmatpush2.msra.mxu0 0.0
    %1311 = vmatprep.subr.mxu0 0.0
    %1312 = vmatpush2.msra.mxu0 0.0
    %1313 = vmatprep.subr.mxu0 0.0
    %1314 = vmatpush2.msra.mxu0 0.0
    %1315 = vmatprep.subr.mxu0 0.0
    %1316 = vmatpush2.msra.mxu0 0.0
    %1317 = vmatprep.subr.mxu0 0.0
    %1318 = vmatpush2.msra.mxu0 0.0
    %1319 = vmatprep.subr.mxu0 0.0
    %1320 = vmatpush2.msra.mxu0 0.0
    %1321 = vmatprep.subr.mxu0 0.0
    %1322 = vmatpush2.msra.mxu0 0.0
    %1323 = vmatprep.subr.mxu0 0.0
    %1324 = vmatpush2.msra.mxu0 0.0
    %1325 = vmatprep.subr.mxu0 0.0
    %1326 = vmatpush2.msra.mxu0 0.0
    %1327 = vmatprep.subr.mxu0 0.0
    %1328 = vmatpush2.msra.mxu0 0.0
    %1329 = vmatprep.mubr.f32.mxu0 0.0
    %1330 = vmatmul.mubr.f32.gmra.mxu0 %v1248
    %v1331 = vpop.f32.mrf.mxu0
    %v1332 = vadd.f32 0.0, %v1331
    %v1333 = vpop.f32.mrf.mxu0
    %1334 = vmatprep.mubr.f32.mxu0 0.0
    %1335 = vmatmul.mubr.f32.gmra.mxu0 %v1251
    %v1336 = vpop.f32.mrf.mxu0
    %v1337 = vadd.f32 0.0, %v1336
    %v1338 = vpop.f32.mrf.mxu0
    %1339 = vmatprep.mubr.f32.mxu0 0.0
    %1340 = vmatmul.mubr.f32.gmra.mxu0 %v1254
    %v1341 = vpop.f32.mrf.mxu0
    %v1342 = vadd.f32 0.0, %v1341
    %v1343 = vpop.f32.mrf.mxu0
    %1344 = vmatprep.mubr.f32.mxu0 0.0
    %1345 = vmatmul.mubr.f32.gmra.mxu0 %v1257
    %v1346 = vpop.f32.mrf.mxu0
    %v1347 = vadd.f32 0.0, %v1346
    %v1348 = vpop.f32.mrf.mxu0
    %1349 = vmatprep.mubr.f32.mxu0 0.0
    %1350 = vmatmul.mubr.f32.gmra.mxu0 %v1260
    %v1351 = vpop.f32.mrf.mxu0
    %v1352 = vadd.f32 0.0, %v1351
    %v1353 = vpop.f32.mrf.mxu0
    %1354 = vmatprep.mubr.f32.mxu0 0.0
    %1355 = vmatmul.mubr.f32.gmra.mxu0 %v1263
    %v1356 = vpop.f32.mrf.mxu0
    %v1357 = vadd.f32 0.0, %v1356
    %v1358 = vpop.f32.mrf.mxu0
    %1359 = vdwg.mxu0
    %v1360 = vadd.f32 %v1230, %v1332
    %v1361 = vadd.f32 %v1231, %v1337
    %v1362 = vadd.f32 %v1232, %v1342
    %v1363 = vadd.f32 %v1233, %v1347
    %v1364 = vadd.f32 %v1234, %v1352
    %v1365 = vadd.f32 %v1235, %v1357
    %v1366 = vld [vmem:[%s4] sm:$0x1]
    %v1368 = vlaneseq
    %v1369 = vshrl.u32 %v1368, 7
    %v1370 = vsub.s32 0, %v1369
    %v1371 = vrot.slane %v1366, %v1370
    %v1373 = vadd.f32 %v1360, %v1371
    %v1374 = vadd.f32 %v1361, %v1371
    %v1375 = vadd.f32 %v1362, %v1371
    %v1376 = vadd.f32 %v1363, %v1371
    %v1377 = vadd.f32 %v1364, %v1371
    %v1378 = vadd.f32 %v1365, %v1371
    %v1379 = vmax.f32 %v1373, 0.0
    %v1380 = vmax.f32 %v1374, 0.0
    %v1381 = vmax.f32 %v1375, 0.0
    %v1382 = vmax.f32 %v1376, 0.0
    %v1383 = vmax.f32 %v1377, 0.0
    %v1384 = vmax.f32 %v1378, 0.0
    %v1385 = vld [vmem:[%s5] sm:$0xff]
    %v1386 = vld [vmem:[%s5 + $0x8] sm:$0xff]
    %v1387 = vld [vmem:[%s5 + $0x10] sm:$0xff]
    %v1388 = vlaneseq
    %v1389 = vand.u32 %v1388, 127
    %v1390 = vmul.f32 %v1379, %v1385
    %v1391 = vmul.f32 %v1380, %v1386
    %v1392 = vmul.f32 %v1381, %v1387
    %vm1393 = vcmask 523264
    %v1394 = vsel %vm1393, %v1390, 0.0
    %v1395 = vsel %vm1393, %v1391, 0.0
    %v1396 = vadd.f32 %v1394, %v1395
    %v1397 = vsel %vm1393, %v1392, 0.0
    %v1398 = vadd.f32 %v1396, %v1397
    %1399 = vadd.xlane.f32.xlu0 %v1398
    %v1400 = vpop.xlane.xlu0 %1399
    %v1401 = vrot.slane %v1400, 4
    %v1402 = vadd.f32 %v1400, %v1401
    %v1403 = vrot.slane %v1402, 2
    %v1404 = vadd.f32 %v1402, %v1403
    %v1405 = vrot.slane %v1404, 1
    %v1406 = vadd.f32 %v1404, %v1405
    %s1407 = vtos %v1406
    %vm1408 = vcmp.eq.s32.totalorder %v1389, 0
    %v1409 = vstv %s1407
    %v1410 = vsel %vm1408, %v1409, 0.0
    %v1411 = vadd.f32 %v1410, 0.0
    %v1412 = vmul.f32 %v1382, %v1385
    %v1413 = vmul.f32 %v1383, %v1386
    %v1414 = vmul.f32 %v1384, %v1387
    %v1415 = vsel %vm1393, %v1412, 0.0
    %v1416 = vsel %vm1393, %v1413, 0.0
    %v1417 = vadd.f32 %v1415, %v1416
    %v1418 = vsel %vm1393, %v1414, 0.0
    %v1419 = vadd.f32 %v1417, %v1418
    %1420 = vadd.xlane.f32.xlu0 %v1419
    %v1421 = vpop.xlane.xlu0 %1420
    %v1422 = vrot.slane %v1421, 4
    %v1423 = vadd.f32 %v1421, %v1422
    %v1424 = vrot.slane %v1423, 2
    %v1425 = vadd.f32 %v1423, %v1424
    %v1426 = vrot.slane %v1425, 1
    %v1427 = vadd.f32 %v1425, %v1426
    %s1428 = vtos %v1427
    %vm1429 = vcmp.eq.s32.totalorder %v1389, 1
    %v1430 = vstv %s1428
    %v1431 = vsel %vm1429, %v1430, 0.0
    %v1432 = vadd.f32 %v1411, %v1431
    %v1433 = vld [vmem:[#allocation4] sm:$0x1]
    %1435 = vset.pattern.permute.xlu0 0
    %1436 = vperm.xlu0 %1435, %v1433
    %v1437 = vpop.permute.xlu0 %1436
    %v1439 = vlaneseq
    %v1440 = vshrl.u32 %v1439, 7
    %v1441 = vsub.s32 0, %v1440
    %v1442 = vrot.slane %v1437, %v1441
    %v1443 = vadd.f32 %v1432, %v1442
    %vm1444 = vcmask 8192
    %1445 = vst.msk [vmem:[#allocation8] sm:$0x1] %vm1444, %v1443
    // Predicated region
    $region34: #{tpu_custom_call.1} parent=1 // pred_check
      _
    $region35: #{tpu_custom_call.1} parent=1 // pred_check_branch
      %1447 = sbr.rel (0) target = $region37
    $region36: #{tpu_custom_call.1} parent=1 // pred_region
      %s1449 = ssub.s32 16, 16
      %1450 = vsyncadd [#allocation7], %s1449
      %s1452 = sshll.u32 [#allocation8], 4
      %s1453 = int_to_ptr.vmem [resolvable:$true] %s1452
      %1455 = dma.vmem_to_hbm [thread:$0]  %s1453, 16, %s7, [#allocation7]
    $region37: #{tpu_custom_call.1} parent=1 // pred_fallthru
      _
    // Predicated region
    $region38: #{tpu_custom_call.1} parent=1 // pred_check
      _
    $region39: #{tpu_custom_call.1} parent=1 // pred_check_branch
      %1457 = sbr.rel (0) target = $region41
    $region40: #{tpu_custom_call.1} parent=1 // pred_region
      %1458 = dma.done [#allocation7], 16
    $region41: #{tpu_custom_call.1} parent=1 // pred_fallthru
      _
    %1459 = vsyncpa [#allocation6], 1
    %1460 = vsyncpa [#allocation7], 1

</llo_original>
